<compile_context>
chip_gen: v7x
topology: tpu7x:2x2x1
jax: 0.10.0
libtpu: 0.0.40
codegen_flags: <defaults>
</compile_context>

<pallas_src>
import functools

import jax
import jax.numpy as jnp
from jax import lax
from jax.experimental import pallas as pl
from jax.experimental.pallas import tpu as pltpu

NEG_SLOPE = 0.2    # LeakyReLU(0.2)
BN_EPS = 1e-5      # nn.BatchNorm2d default eps
LANE = 128         # TPU lane width


# ----------------------------- Pallas kernels ------------------------------

def _l1_l2_kernel(x_ref, w1_ref, b1_ref, w2_ref,
                  y2_ref, psum_ref, pssq_ref, *, rows, tm):
    """Fused conv1(1x1)+bias+LeakyReLU -> conv2(1x1) + per-tile BN stats."""
    # layer 1: bf16 MXU matmul, f32 accumulate, f32 bias + LeakyReLU
    h1 = jnp.dot(x_ref[...], w1_ref[...], preferred_element_type=jnp.float32)
    h1 = h1 + b1_ref[...]
    h1 = jnp.where(h1 >= 0, h1, NEG_SLOPE * h1)
    # layer 2 (no bias): bf16 MXU matmul, f32 accumulate
    y2 = jnp.dot(h1.astype(jnp.bfloat16), w2_ref[...],
                 preferred_element_type=jnp.float32)
    y2_ref[...] = y2.astype(y2_ref.dtype)

    # per-tile partial BN statistics from the f32 accumulator, masking any
    # padded rows so they do not pollute the batch statistics.
    row0 = pl.program_id(0) * tm
    rid = row0 + lax.broadcasted_iota(jnp.int32, (tm, 1), 0)
    m = (rid < rows).astype(jnp.float32)
    ym = y2 * m
    psum_ref[...] = jnp.sum(ym, axis=0, keepdims=True)[jnp.newaxis]
    pssq_ref[...] = jnp.sum(ym * y2, axis=0, keepdims=True)[jnp.newaxis]


def _bn_l3_kernel(y2_ref, scale_ref, shift_ref, w3_ref, o_ref):
    """Fused BatchNorm affine (precomputed scale/shift) + LeakyReLU + conv3."""
    z = y2_ref[...].astype(jnp.float32) * scale_ref[...] + shift_ref[...]
    z = jnp.where(z >= 0, z, NEG_SLOPE * z)
    o_ref[...] = jnp.dot(z.astype(jnp.bfloat16), w3_ref[...],
                         preferred_element_type=jnp.float32)


# --------------------------- pallas_call wrappers ---------------------------

def _compiler_params():
    return pltpu.CompilerParams(
        dimension_semantics=("parallel",),          # row tiles are independent
        vmem_limit_bytes=32 * 1024 * 1024)          # fits v7x's 64 MiB VMEM


def fused_l1_l2(x, w1, b1, w2, *, rows, tm):
    rows_p, cin_p = x.shape
    c1_p = w1.shape[1]
    c2_p = w2.shape[1]
    num_tiles = rows_p // tm
    kernel = functools.partial(_l1_l2_kernel, rows=rows, tm=tm)
    return pl.pallas_call(
        kernel,
        grid=(num_tiles,),
        in_specs=[
            pl.BlockSpec((tm, cin_p), lambda i: (i, 0)),
            pl.BlockSpec((cin_p, c1_p), lambda i: (0, 0)),
            pl.BlockSpec((1, c1_p), lambda i: (0, 0)),
            pl.BlockSpec((c1_p, c2_p), lambda i: (0, 0)),
        ],
        out_specs=(
            pl.BlockSpec((tm, c2_p), lambda i: (i, 0)),
            pl.BlockSpec((1, 1, c2_p), lambda i: (i, 0, 0)),
            pl.BlockSpec((1, 1, c2_p), lambda i: (i, 0, 0)),
        ),
        out_shape=(
            jax.ShapeDtypeStruct((rows_p, c2_p), jnp.bfloat16),
            jax.ShapeDtypeStruct((num_tiles, 1, c2_p), jnp.float32),
            jax.ShapeDtypeStruct((num_tiles, 1, c2_p), jnp.float32),
        ),
        compiler_params=_compiler_params(),
    )(x, w1, b1, w2)


def fused_bn_l3(y2, scale, shift, w3, *, tm):
    rows_p, c2_p = y2.shape
    cout_p = w3.shape[1]
    num_tiles = rows_p // tm
    return pl.pallas_call(
        _bn_l3_kernel,
        grid=(num_tiles,),
        in_specs=[
            pl.BlockSpec((tm, c2_p), lambda i: (i, 0)),
            pl.BlockSpec((1, c2_p), lambda i: (0, 0)),
            pl.BlockSpec((1, c2_p), lambda i: (0, 0)),
            pl.BlockSpec((c2_p, cout_p), lambda i: (0, 0)),
        ],
        out_specs=pl.BlockSpec((tm, cout_p), lambda i: (i, 0)),
        out_shape=jax.ShapeDtypeStruct((rows_p, cout_p), jnp.float32),
        compiler_params=_compiler_params(),
    )(y2, scale, shift, w3)


# ------------------------------- JAX glue -----------------------------------

def _pad_to(n, m):
    return ((n + m - 1) // m) * m


def _w1x1_to_mat(w, cin_pad, cout_pad):
    """PyTorch 1x1-conv weight (Cout, Cin, 1, 1) -> zero-padded (Cin_p, Cout_p)."""
    cout, cin = w.shape[0], w.shape[1]
    m = jnp.transpose(w[:, :, 0, 0], (1, 0))     # (Cin, Cout)
    return jnp.pad(m, ((0, cin_pad - cin), (0, cout_pad - cout)))


def init_params(key, input_nc, ndf=64):
    """Mirror PixelDiscriminator.__init__ (BatchNorm2d => conv2/conv3 bias-free)."""
    k1, kb, k2, kg, kbe, k3 = jax.random.split(key, 6)
    return dict(
        w1=0.05 * jax.random.normal(k1, (ndf, input_nc, 1, 1), jnp.float32),
        b1=0.05 * jax.random.normal(kb, (ndf,), jnp.float32),
        w2=0.05 * jax.random.normal(k2, (2 * ndf, ndf, 1, 1), jnp.float32),
        gamma=1.0 + 0.05 * jax.random.normal(kg, (2 * ndf,), jnp.float32),
        beta=0.05 * jax.random.normal(kbe, (2 * ndf,), jnp.float32),
        w3=0.05 * jax.random.normal(k3, (1, 2 * ndf, 1, 1), jnp.float32),
    )


def pixel_discriminator_forward(x_nchw, params, tm=256):
    N, cin, H, W = x_nchw.shape
    rows = N * H * W
    ndf = params["w1"].shape[0]
    c2 = params["w2"].shape[0]

    cin_p = _pad_to(cin, LANE)       # K of matmul 1, lane-padded to 128
    c1_p = _pad_to(ndf, LANE)        # Cout1 / K of matmul 2
    c2_p = _pad_to(c2, LANE)         # Cout2 / K of matmul 3
    cout_p = LANE                    # final Cout=1 padded lane-dense, sliced after

    rows_p = _pad_to(rows, tm)
    # -> rows (spatial-major), channels last; bf16 stream to the MXU
    x = jnp.transpose(x_nchw, (0, 2, 3, 1)).reshape(rows, cin).astype(jnp.float32)
    x = jnp.pad(x, ((0, rows_p - rows), (0, cin_p - cin))).astype(jnp.bfloat16)

    w1m = _w1x1_to_mat(params["w1"], cin_p, c1_p).astype(jnp.bfloat16)
    b1 = jnp.pad(params["b1"], (0, c1_p - ndf)).reshape(1, c1_p).astype(jnp.float32)
    w2m = _w1x1_to_mat(params["w2"], c1_p, c2_p).astype(jnp.bfloat16)
    w3m = _w1x1_to_mat(params["w3"], c2_p, cout_p).astype(jnp.bfloat16)
    gamma = jnp.pad(params["gamma"], (0, c2_p - c2)).astype(jnp.float32)
    beta = jnp.pad(params["beta"], (0, c2_p - c2)).astype(jnp.float32)

    # kernel A: conv1 + lrelu + conv2 + per-tile BN partial stats
    y2, psum, pssq = fused_l1_l2(x, w1m, b1, w2m, rows=rows, tm=tm)

    # fold train-mode batch stats into per-channel scale/shift (biased var,
    # clamped to >= 0; stats accumulated in f32 inside the kernel).
    s = jnp.sum(psum[:, 0, :], axis=0)
    ss = jnp.sum(pssq[:, 0, :], axis=0)
    n = jnp.float32(rows)
    mean = s / n
    var = jnp.maximum(ss / n - mean * mean, 0.0)
    scale = gamma * lax.rsqrt(var + BN_EPS)          # zero on padded channels
    shift = beta - mean * scale

    # kernel B: BN affine + lrelu + conv3 (lane-dense 128-wide output)
    out = fused_bn_l3(y2, scale.reshape(1, c2_p), shift.reshape(1, c2_p),
                      w3m, tm=tm)
    out = out[:rows, :1].reshape(N, H, W, 1)
    return jnp.transpose(out, (0, 3, 1, 2))          # -> NCHW


# ------------------------- pure-JAX reference check -------------------------

def reference_forward(x_nchw, params):
    x = jnp.transpose(x_nchw, (0, 2, 3, 1)).astype(jnp.float32)    # NHWC
    w1 = params["w1"][:, :, 0, 0]
    h1 = jnp.einsum("nhwc,oc->nhwo", x, w1) + params["b1"]
    h1 = jnp.where(h1 >= 0, h1, NEG_SLOPE * h1)
    w2 = params["w2"][:, :, 0, 0]
    y2 = jnp.einsum("nhwc,oc->nhwo", h1, w2)
    mean = jnp.mean(y2, axis=(0, 1, 2))
    var = jnp.var(y2, axis=(0, 1, 2))                               # biased
    h2 = (y2 - mean) * lax.rsqrt(var + BN_EPS) * params["gamma"] + params["beta"]
    h2 = jnp.where(h2 >= 0, h2, NEG_SLOPE * h2)
    w3 = params["w3"][:, :, 0, 0]
    out = jnp.einsum("nhwc,oc->nhwo", h2, w3)
    return jnp.transpose(out, (0, 3, 1, 2))


if __name__ == "__main__":
    key = jax.random.PRNGKey(0)
    k_x, k_p = jax.random.split(key)

    # Small config: batch=2, input_nc=4, 16x16 images, ndf=32.
    N, input_nc, H, W = 2, 4, 16, 16
    x = jax.random.normal(k_x, (N, input_nc, H, W), jnp.float32)    # NCHW
    params = init_params(k_p, input_nc=input_nc, ndf=32)

    out = pixel_discriminator_forward(x, params, tm=256)
    out = jax.block_until_ready(out)

    ref = reference_forward(x, params)
    assert out.shape == ref.shape == (N, 1, H, W), (out.shape, ref.shape)
    max_err = float(jnp.max(jnp.abs(out - ref)))
    # bf16 MXU inputs / bf16 intermediate storage vs. pure-f32 reference.
    assert jnp.allclose(out, ref, atol=2e-2, rtol=2e-2), max_err

    print("KERNEL_OK")
</pallas_src>

<mosaic_0001>
module attributes {stable_mosaic.version = 11 : i64} {
  func.func @_l1_l2_kernel(%arg0: i32, %arg1: memref<256x128xbf16, #tpu.memory_space<vmem>>, %arg2: memref<128x128xbf16, #tpu.memory_space<vmem>>, %arg3: memref<1x128xf32, #tpu.memory_space<vmem>>, %arg4: memref<128x128xbf16, #tpu.memory_space<vmem>>, %arg5: memref<256x128xbf16, #tpu.memory_space<vmem>>, %arg6: memref<1x1x128xf32, #tpu.memory_space<vmem>>, %arg7: memref<1x1x128xf32, #tpu.memory_space<vmem>>) attributes {dimension_semantics = [#tpu.dimension_semantics<parallel>], iteration_bounds = array<i64: 2>, scalar_prefetch = 0 : i64, scratch_operands = 0 : i64, tpu.core_type = #tpu.core_type<tc>, window_params = [{transform_indices = @transform_0, window_bounds = array<i64: 256, 128>}, {pipeline_mode = #tpu.pipeline_mode<synchronous>, transform_indices = @transform_1, window_bounds = array<i64: 128, 128>}, {pipeline_mode = #tpu.pipeline_mode<synchronous>, transform_indices = @transform_2, window_bounds = array<i64: 1, 128>}, {pipeline_mode = #tpu.pipeline_mode<synchronous>, transform_indices = @transform_3, window_bounds = array<i64: 128, 128>}, {transform_indices = @transform_4, window_bounds = array<i64: 256, 128>}, {transform_indices = @transform_5, window_bounds = array<i64: 1, 1, 128>}, {transform_indices = @transform_6, window_bounds = array<i64: 1, 1, 128>}]} {
    %c0 = arith.constant 0 : index
    %c0_0 = arith.constant 0 : index
    %0 = vector.load %arg1[%c0, %c0_0] : memref<256x128xbf16, #tpu.memory_space<vmem>>, vector<256x128xbf16>
    %c0_1 = arith.constant 0 : index
    %c0_2 = arith.constant 0 : index
    %1 = vector.load %arg2[%c0_1, %c0_2] : memref<128x128xbf16, #tpu.memory_space<vmem>>, vector<128x128xbf16>
    %cst = arith.constant dense<0.000000e+00> : vector<256x128xf32>
    %2 = tpu.matmul %0, %1, %cst {dimension_numbers = #tpu.dot_dimension_numbers<[1], [0], [0], [1], [0, 0, 1, 1], [], []>} : vector<256x128xbf16>, vector<128x128xbf16>, vector<256x128xf32> -> vector<256x128xf32>
    %c0_3 = arith.constant 0 : index
    %c0_4 = arith.constant 0 : index
    %3 = vector.load %arg3[%c0_3, %c0_4] : memref<1x128xf32, #tpu.memory_space<vmem>>, vector<1x128xf32>
    %4 = vector.broadcast %3 : vector<1x128xf32> to vector<256x128xf32>
    %5 = arith.addf %2, %4 : vector<256x128xf32>
    %cst_5 = arith.constant 0.000000e+00 : f32
    %6 = vector.broadcast %cst_5 : f32 to vector<256x128xf32>
    %7 = arith.cmpf oge, %5, %6 : vector<256x128xf32>
    %cst_6 = arith.constant 2.000000e-01 : f32
    %8 = vector.broadcast %cst_6 : f32 to vector<256x128xf32>
    %9 = arith.mulf %8, %5 : vector<256x128xf32>
    %10 = arith.select %7, %5, %9 : vector<256x128xi1>, vector<256x128xf32>
    %11 = arith.truncf %10 : vector<256x128xf32> to vector<256x128xbf16>
    %c0_7 = arith.constant 0 : index
    %c0_8 = arith.constant 0 : index
    %12 = vector.load %arg4[%c0_7, %c0_8] : memref<128x128xbf16, #tpu.memory_space<vmem>>, vector<128x128xbf16>
    %cst_9 = arith.constant dense<0.000000e+00> : vector<256x128xf32>
    %13 = tpu.matmul %11, %12, %cst_9 {dimension_numbers = #tpu.dot_dimension_numbers<[1], [0], [0], [1], [0, 0, 1, 1], [], []>} : vector<256x128xbf16>, vector<128x128xbf16>, vector<256x128xf32> -> vector<256x128xf32>
    %14 = arith.truncf %13 : vector<256x128xf32> to vector<256x128xbf16>
    %c0_10 = arith.constant 0 : index
    %c0_11 = arith.constant 0 : index
    %15 = vector.load %arg5[%c0_10, %c0_11] : memref<256x128xbf16, #tpu.memory_space<vmem>>, vector<256x128xbf16>
    tpu.vector_store %arg5[%c0_10, %c0_11], %14 {strides = array<i32>} : memref<256x128xbf16, #tpu.memory_space<vmem>>, vector<256x128xbf16>,
    %c256_i32 = arith.constant 256 : i32
    %16 = arith.muli %arg0, %c256_i32 : i32
    %17 = tpu.iota {dimensions = array<i32: 0>} : vector<256x1xi32>
    %18 = vector.broadcast %16 : i32 to vector<256x1xi32>
    %19 = arith.addi %18, %17 : vector<256x1xi32>
    %c512_i32 = arith.constant 512 : i32
    %20 = vector.broadcast %c512_i32 : i32 to vector<256x1xi32>
    %21 = arith.cmpi slt, %19, %20 : vector<256x1xi32>
    %22 = arith.extui %21 : vector<256x1xi1> to vector<256x1xi32>
    %23 = arith.sitofp %22 : vector<256x1xi32> to vector<256x1xf32>
    %24 = vector.broadcast %23 : vector<256x1xf32> to vector<256x128xf32>
    %25 = arith.mulf %13, %24 : vector<256x128xf32>
    %cst_12 = arith.constant dense<0.000000e+00> : vector<128xf32>
    %26 = vector.multi_reduction <add>, %25, %cst_12 [0] : vector<256x128xf32> to vector<128xf32>
    %27 = vector.shape_cast %26 : vector<128xf32> to vector<1x128xf32>
    %28 = vector.shape_cast %27 : vector<1x128xf32> to vector<1x1x128xf32>
    %c0_13 = arith.constant 0 : index
    %c0_14 = arith.constant 0 : index
    %c0_15 = arith.constant 0 : index
    %29 = vector.load %arg6[%c0_13, %c0_14, %c0_15] : memref<1x1x128xf32, #tpu.memory_space<vmem>>, vector<1x1x128xf32>
    tpu.vector_store %arg6[%c0_13, %c0_14, %c0_15], %28 {strides = array<i32>} : memref<1x1x128xf32, #tpu.memory_space<vmem>>, vector<1x1x128xf32>,
    %30 = arith.mulf %25, %13 : vector<256x128xf32>
    %cst_16 = arith.constant dense<0.000000e+00> : vector<128xf32>
    %31 = vector.multi_reduction <add>, %30, %cst_16 [0] : vector<256x128xf32> to vector<128xf32>
    %32 = vector.shape_cast %31 : vector<128xf32> to vector<1x128xf32>
    %33 = vector.shape_cast %32 : vector<1x128xf32> to vector<1x1x128xf32>
    %c0_17 = arith.constant 0 : index
    %c0_18 = arith.constant 0 : index
    %c0_19 = arith.constant 0 : index
    %34 = vector.load %arg7[%c0_17, %c0_18, %c0_19] : memref<1x1x128xf32, #tpu.memory_space<vmem>>, vector<1x1x128xf32>
    tpu.vector_store %arg7[%c0_17, %c0_18, %c0_19], %33 {strides = array<i32>} : memref<1x1x128xf32, #tpu.memory_space<vmem>>, vector<1x1x128xf32>,
    return
  }
  func.func @transform_0(%arg0: i32) -> (i32, i32) {
    %c0_i32 = arith.constant 0 : i32
    %c0_i32_0 = arith.constant 0 : i32
    return %arg0, %c0_i32 : i32, i32
  }
  func.func @transform_1(%arg0: i32) -> (i32, i32) {
    %c0_i32 = arith.constant 0 : i32
    %c0_i32_0 = arith.constant 0 : i32
    %c0_i32_1 = arith.constant 0 : i32
    return %c0_i32, %c0_i32_0 : i32, i32
  }
  func.func @transform_2(%arg0: i32) -> (i32, i32) {
    %c0_i32 = arith.constant 0 : i32
    %c0_i32_0 = arith.constant 0 : i32
    %c0_i32_1 = arith.constant 0 : i32
    return %c0_i32, %c0_i32_0 : i32, i32
  }
  func.func @transform_3(%arg0: i32) -> (i32, i32) {
    %c0_i32 = arith.constant 0 : i32
    %c0_i32_0 = arith.constant 0 : i32
    %c0_i32_1 = arith.constant 0 : i32
    return %c0_i32, %c0_i32_0 : i32, i32
  }
  func.func @transform_4(%arg0: i32) -> (i32, i32) {
    %c0_i32 = arith.constant 0 : i32
    %c0_i32_0 = arith.constant 0 : i32
    return %arg0, %c0_i32 : i32, i32
  }
  func.func @transform_5(%arg0: i32) -> (i32, i32, i32) {
    %c0_i32 = arith.constant 0 : i32
    %c0_i32_0 = arith.constant 0 : i32
    %c0_i32_1 = arith.constant 0 : i32
    return %arg0, %c0_i32, %c0_i32_0 : i32, i32, i32
  }
  func.func @transform_6(%arg0: i32) -> (i32, i32, i32) {
    %c0_i32 = arith.constant 0 : i32
    %c0_i32_0 = arith.constant 0 : i32
    %c0_i32_1 = arith.constant 0 : i32
    return %arg0, %c0_i32, %c0_i32_0 : i32, i32, i32
  }
}

</mosaic_0001>

<llo_original>
// kernel: tpu_custom_call.1
$region0: #{tpu_custom_call.1}
  #allocation0 [shape = 'u32[]', space=smem, size = 0x4, offset = 0x4, fixed_abs, tag = 'smem constant byte address 0x4 - core index']
  #allocation1 [shape = 'u32[144,128]{1,0:T(1,128)}', space=vmem, size = 0x12000, scoped, tag = 'internal scratch']
  %s0 = inlined_call_operand.hbm [shape: bf16[512,128], index: 0, kind: input, shape index: {}]
  %s1 = inlined_call_operand.hbm [shape: bf16[128,128], index: 1, kind: input, shape index: {}]
  %s2 = inlined_call_operand.vmem [shape: f32[1,128], index: 2, kind: input, shape index: {}]
  %s3 = inlined_call_operand.hbm [shape: bf16[128,128], index: 3, kind: input, shape index: {}]
  %s4 = inlined_call_operand.hbm [shape: bf16[512,128], index: 4, kind: output, shape index: {0}]
  %s5 = inlined_call_operand.hbm [shape: f32[2,1,128], index: 5, kind: output, shape index: {1}]
  %s6 = inlined_call_operand.hbm [shape: f32[2,1,128], index: 6, kind: output, shape index: {2}]
  %7 = xla_tuple %s4, %s5, %s6
  %s8 = sld [smem:[#allocation0]]
  $region77: #{tpu_custom_call.1} parent=0
    _
  %s10 = ssub.s32 1, %s8
  %s11 = scalar_select 0, %s10, %s8
  $region1: #{tpu_custom_call.1} parent=0
    #allocation2 [shape = 'u8[131072]{0}', space=vmem, size = 0x20000, scoped, tag = 'input window, operand 0']
    #allocation3 [shape = 's32[2]{0}', space=sflag, size = 0x8, scoped, tag = 'scoped memory for tpu_custom_call.1']
    #allocation4 [shape = 's32[2]{0}', space=sflag, size = 0x8, scoped, tag = 'scoped memory for tpu_custom_call.1']
    #allocation5 [shape = 'u8[32768]{0}', space=vmem, size = 0x8000, scoped, tag = 'input window, operand 1, single buffered']
    #allocation6 [shape = 's32[1]{0}', space=sflag, size = 0x4, scoped, tag = 'scoped memory for tpu_custom_call.1']
    #allocation7 [shape = 'u8[32768]{0}', space=vmem, size = 0x8000, scoped, tag = 'input window, operand 3, single buffered']
    #allocation8 [shape = 'u8[131072]{0}', space=vmem, size = 0x20000, scoped, tag = 'output window, operand 0']
    #allocation9 [shape = 'u8[1024]{0}', space=vmem, size = 0x400, scoped, tag = 'output window, operand 1']
    #allocation10 [shape = 's32[2]{0}', space=sflag, size = 0x8, scoped, tag = 'scoped memory for tpu_custom_call.1']
    #allocation11 [shape = 'u8[1024]{0}', space=vmem, size = 0x400, scoped, tag = 'output window, operand 2']
    %12 = vsyncpa [#allocation3], 0
    %s13 = scalar_lea.sflag [#allocation3], 1
    %14 = vsyncpa %s13, 0
    %15 = vsyncpa [#allocation6], 0
    %16 = vsyncpa [#allocation4], 0
    %s17 = scalar_lea.sflag [#allocation4], 1
    %18 = vsyncpa %s17, 0
    %19 = vsyncpa [#allocation10], 0
    %s20 = scalar_lea.sflag [#allocation10], 1
    %21 = vsyncpa %s20, 0
    loop: start=0, step=1, limit=4
    $region2: #{tpu_custom_call.1} parent=1 // loop_pre_header
      _
    $region3: #{tpu_custom_call.1} parent=1 // loop_header
      %s23 = sphi 0, %s27
      %p24 = scmp.ge.s32.totalorder %s23, 4
      %s33 = sphi 0, %s35
      %s36 = sphi 0, %s33
      %s37 = sphi 0, %s36
      %s53 = sphi 0, %s37
      %s57 = sphi 0, %s57
      %s59 = sphi 0, %s57
      %s60 = sphi 0, %s59
      %s74 = sphi 0, %s60
      %s78 = sphi 0, %s78
      %s80 = sphi 0, %s78
      %s81 = sphi 0, %s80
      %s95 = sphi 0, %s81
      %s99 = sphi 0, %s99
      %s101 = sphi 0, %s99
      %s102 = sphi 0, %s101
      %s116 = sphi 0, %s102
      %s122 = sphi 0, %s124
      %s125 = sphi 0, %s122
      %s126 = sphi 0, %s125
      %s142 = sphi 0, %s126
      %s148 = sphi 0, %s150
      %s151 = sphi 0, %s148
      %s152 = sphi 0, %s151
      %s168 = sphi 0, %s152
      %s174 = sphi 0, %s176
      %s177 = sphi 0, %s174
      %s178 = sphi 0, %s177
      %s194 = sphi 0, %s178
    $region4: #{tpu_custom_call.1} parent=1 // loop_header_branch
      %26 = sbr.rel (%p24) target = $region8
    $region5: #{tpu_custom_call.1} parent=1 // loop_body
      %s28 = ssub.s32 %s23, 1
      %s29 = ssub.s32 %s23, 2
      %s30 = sadd.s32 %s23, 1
      %s31 = ssub.s32 %s23, %s30
      %p32 = scmp.eq.s32.totalorder %s31, 0
      %s34 = sadd.s32 %s33, 1
      %s35 = scalar_select %p32, %s33, %s34
      %p38 = pneg %p32
      %p39 = scmp.eq.s32.totalorder %s23, 1
      %p40 = por %p38, %p39
      %p41 = scmp.ne.s32.totalorder %s33, %s36
      %p42 = scmp.eq.s32.totalorder %s23, 0
      %p43 = por %p41, %p42
      %p44 = scmp.ne.s32.totalorder %s33, %s36
      %p45 = scmp.eq.s32.totalorder %s28, 1
      %p46 = por %p44, %p45
      %p47 = scmp.ne.s32.totalorder %s36, %s37
      %p48 = scmp.eq.s32.totalorder %s28, 0
      %p49 = por %p47, %p48
      %p50 = scmp.ne.s32.totalorder %s36, %s37
      %p51 = scmp.eq.s32.totalorder %s29, 1
      %p52 = por %p50, %p51
      %p54 = scmp.ne.s32.totalorder %s37, %s53
      %p55 = scmp.eq.s32.totalorder %s29, 0
      %p56 = por %p54, %p55
      %s58 = sadd.s32 %s57, 1
      %p61 = scmp.eq.s32.totalorder %s23, 1
      %p62 = scmp.ne.s32.totalorder %s57, %s59
      %p63 = scmp.eq.s32.totalorder %s23, 0
      %p64 = por %p62, %p63
      %p65 = scmp.ne.s32.totalorder %s57, %s59
      %p66 = scmp.eq.s32.totalorder %s28, 1
      %p67 = por %p65, %p66
      %p68 = scmp.ne.s32.totalorder %s59, %s60
      %p69 = scmp.eq.s32.totalorder %s28, 0
      %p70 = por %p68, %p69
      %p71 = scmp.ne.s32.totalorder %s59, %s60
      %p72 = scmp.eq.s32.totalorder %s29, 1
      %p73 = por %p71, %p72
      %p75 = scmp.ne.s32.totalorder %s60, %s74
      %p76 = scmp.eq.s32.totalorder %s29, 0
      %p77 = por %p75, %p76
      %s79 = sadd.s32 %s78, 1
      %p82 = scmp.eq.s32.totalorder %s23, 1
      %p83 = scmp.ne.s32.totalorder %s78, %s80
      %p84 = scmp.eq.s32.totalorder %s23, 0
      %p85 = por %p83, %p84
      %p86 = scmp.ne.s32.totalorder %s78, %s80
      %p87 = scmp.eq.s32.totalorder %s28, 1
      %p88 = por %p86, %p87
      %p89 = scmp.ne.s32.totalorder %s80, %s81
      %p90 = scmp.eq.s32.totalorder %s28, 0
      %p91 = por %p89, %p90
      %p92 = scmp.ne.s32.totalorder %s80, %s81
      %p93 = scmp.eq.s32.totalorder %s29, 1
      %p94 = por %p92, %p93
      %p96 = scmp.ne.s32.totalorder %s81, %s95
      %p97 = scmp.eq.s32.totalorder %s29, 0
      %p98 = por %p96, %p97
      %s100 = sadd.s32 %s99, 1
      %p103 = scmp.eq.s32.totalorder %s23, 1
      %p104 = scmp.ne.s32.totalorder %s99, %s101
      %p105 = scmp.eq.s32.totalorder %s23, 0
      %p106 = por %p104, %p105
      %p107 = scmp.ne.s32.totalorder %s99, %s101
      %p108 = scmp.eq.s32.totalorder %s28, 1
      %p109 = por %p107, %p108
      %p110 = scmp.ne.s32.totalorder %s101, %s102
      %p111 = scmp.eq.s32.totalorder %s28, 0
      %p112 = por %p110, %p111
      %p113 = scmp.ne.s32.totalorder %s101, %s102
      %p114 = scmp.eq.s32.totalorder %s29, 1
      %p115 = por %p113, %p114
      %p117 = scmp.ne.s32.totalorder %s102, %s116
      %p118 = scmp.eq.s32.totalorder %s29, 0
      %p119 = por %p117, %p118
      %s120 = ssub.s32 %s23, %s30
      %p121 = scmp.eq.s32.totalorder %s120, 0
      %s123 = sadd.s32 %s122, 1
      %s124 = scalar_select %p121, %s122, %s123
      %p127 = pneg %p121
      %p128 = scmp.eq.s32.totalorder %s23, 1
      %p129 = por %p127, %p128
      %p130 = scmp.ne.s32.totalorder %s122, %s125
      %p131 = scmp.eq.s32.totalorder %s23, 0
      %p132 = por %p130, %p131
      %p133 = scmp.ne.s32.totalorder %s122, %s125
      %p134 = scmp.eq.s32.totalorder %s28, 1
      %p135 = por %p133, %p134
      %p136 = scmp.ne.s32.totalorder %s125, %s126
      %p137 = scmp.eq.s32.totalorder %s28, 0
      %p138 = por %p136, %p137
      %p139 = scmp.ne.s32.totalorder %s125, %s126
      %p140 = scmp.eq.s32.totalorder %s29, 1
      %p141 = por %p139, %p140
      %p143 = scmp.ne.s32.totalorder %s126, %s142
      %p144 = scmp.eq.s32.totalorder %s29, 0
      %p145 = por %p143, %p144
      %s146 = ssub.s32 %s23, %s30
      %p147 = scmp.eq.s32.totalorder %s146, 0
      %s149 = sadd.s32 %s148, 1
      %s150 = scalar_select %p147, %s148, %s149
      %p153 = pneg %p147
      %p154 = scmp.eq.s32.totalorder %s23, 1
      %p155 = por %p153, %p154
      %p156 = scmp.ne.s32.totalorder %s148, %s151
      %p157 = scmp.eq.s32.totalorder %s23, 0
      %p158 = por %p156, %p157
      %p159 = scmp.ne.s32.totalorder %s148, %s151
      %p160 = scmp.eq.s32.totalorder %s28, 1
      %p161 = por %p159, %p160
      %p162 = scmp.ne.s32.totalorder %s151, %s152
      %p163 = scmp.eq.s32.totalorder %s28, 0
      %p164 = por %p162, %p163
      %p165 = scmp.ne.s32.totalorder %s151, %s152
      %p166 = scmp.eq.s32.totalorder %s29, 1
      %p167 = por %p165, %p166
      %p169 = scmp.ne.s32.totalorder %s152, %s168
      %p170 = scmp.eq.s32.totalorder %s29, 0
      %p171 = por %p169, %p170
      %s172 = ssub.s32 %s23, %s30
      %p173 = scmp.eq.s32.totalorder %s172, 0
      %s175 = sadd.s32 %s174, 1
      %s176 = scalar_select %p173, %s174, %s175
      %p179 = pneg %p173
      %p180 = scmp.eq.s32.totalorder %s23, 1
      %p181 = por %p179, %p180
      %p182 = scmp.ne.s32.totalorder %s174, %s177
      %p183 = scmp.eq.s32.totalorder %s23, 0
      %p184 = por %p182, %p183
      %p185 = scmp.ne.s32.totalorder %s174, %s177
      %p186 = scmp.eq.s32.totalorder %s28, 1
      %p187 = por %p185, %p186
      %p188 = scmp.ne.s32.totalorder %s177, %s178
      %p189 = scmp.eq.s32.totalorder %s28, 0
      %p190 = por %p188, %p189
      %p191 = scmp.ne.s32.totalorder %s177, %s178
      %p192 = scmp.eq.s32.totalorder %s29, 1
      %p193 = por %p191, %p192
      %p195 = scmp.ne.s32.totalorder %s178, %s194
      %p196 = scmp.eq.s32.totalorder %s29, 0
      %p197 = por %p195, %p196
      %p198 = scmp.le.s32.totalorder 1, %s23
      %p199 = scmp.lt.s32.totalorder %s23, 3
      %p200 = pnand %p198, %p199
      %p201 = pneg %p200
      // Predicated region
      $region9: #{tpu_custom_call.1} parent=5 // pred_check
        _
      $region10: #{tpu_custom_call.1} parent=5 // pred_check_branch
        %203 = sbr.rel (%p200) target = $region12
      $region11: #{tpu_custom_call.1} parent=5 // pred_region
        %s204 = ssub.s32 %s23, 1
        // Predicated region
        $region13: #{tpu_custom_call.1} parent=11 // pred_check
          %p205 = pneg %p70
        $region14: #{tpu_custom_call.1} parent=11 // pred_check_branch
          %207 = sbr.rel (%p205) target = $region16
        $region15: #{tpu_custom_call.1} parent=11 // pred_region
          %s209 = ssub.s32 1024, 1024
          %210 = vsyncadd [#allocation6], %s209
          %s211 = sshll.u32 [#allocation5], 4
          %s212 = int_to_ptr.vmem [resolvable:$true] %s211
          %217 = dma.hbm_to_vmem [thread:$0]  %s1, 1024, %s212, [#allocation6], 64, 64, 4
        $region16: #{tpu_custom_call.1} parent=11 // pred_fallthru
          _
        // Predicated region
        $region17: #{tpu_custom_call.1} parent=11 // pred_check
          %p218 = pneg %p91
        $region18: #{tpu_custom_call.1} parent=11 // pred_check_branch
          %220 = sbr.rel (%p218) target = $region20
        $region19: #{tpu_custom_call.1} parent=11 // pred_region
          _
        $region20: #{tpu_custom_call.1} parent=11 // pred_fallthru
          _
        // Predicated region
        $region21: #{tpu_custom_call.1} parent=11 // pred_check
          %p221 = pneg %p112
        $region22: #{tpu_custom_call.1} parent=11 // pred_check_branch
          %223 = sbr.rel (%p221) target = $region24
        $region23: #{tpu_custom_call.1} parent=11 // pred_region
          %s225 = ssub.s32 1024, 1024
          %226 = vsyncadd [#allocation6], %s225
          %s227 = sshll.u32 [#allocation7], 4
          %s228 = int_to_ptr.vmem [resolvable:$true] %s227
          %233 = dma.hbm_to_vmem [thread:$0]  %s3, 1024, %s228, [#allocation6], 64, 64, 4
        $region24: #{tpu_custom_call.1} parent=11 // pred_fallthru
          _
      $region12: #{tpu_custom_call.1} parent=5 // pred_fallthru
        _
      %p234 = scmp.lt.s32.totalorder %s23, 2
      // Predicated region
      $region25: #{tpu_custom_call.1} parent=5 // pred_check
        %p235 = pneg %p234
      $region26: #{tpu_custom_call.1} parent=5 // pred_check_branch
        %237 = sbr.rel (%p235) target = $region28
      $region27: #{tpu_custom_call.1} parent=5 // pred_region
        // Predicated region
        $region29: #{tpu_custom_call.1} parent=27 // pred_check
          %p238 = pneg %p43
        $region30: #{tpu_custom_call.1} parent=27 // pred_check_branch
          %240 = sbr.rel (%p238) target = $region32
        $region31: #{tpu_custom_call.1} parent=27 // pred_region
          %s241 = sand.u32 %s33, 1
          %s242 = scalar_lea.sflag [#allocation3], %s241
          %s243 = sand.u32 %s33, 1
          %s244 = smul.addr %s243, 128
          %s245 = scalar_lea.vmem [#allocation2], %s244
          %s246 = smul.u32 32, %s23
          %s248 = ssub.s32 2048, 2048
          %249 = vsyncadd %s242, %s248
          %s250 = smul.addr %s246, 64
          %s251 = scalar_lea.hbm %s0, %s250
          %s252 = sshll.u32 %s245, 4
          %s253 = int_to_ptr.vmem [resolvable:$true] %s252
          %258 = dma.hbm_to_vmem [thread:$0]  %s251, 2048, %s253, %s242, 64, 64, 4
        $region32: #{tpu_custom_call.1} parent=27 // pred_fallthru
          _
      $region28: #{tpu_custom_call.1} parent=5 // pred_fallthru
        _
      %p259 = scmp.le.s32.totalorder 1, %s23
      %p260 = scmp.lt.s32.totalorder %s23, 3
      %p261 = pnand %p259, %p260
      %p262 = pneg %p261
      // Predicated region
      $region33: #{tpu_custom_call.1} parent=5 // pred_check
        _
      $region34: #{tpu_custom_call.1} parent=5 // pred_check_branch
        %264 = sbr.rel (%p261) target = $region36
      $region35: #{tpu_custom_call.1} parent=5 // pred_region
        %s265 = ssub.s32 %s23, 1
        %s266 = sand.u32 %s36, 1
        %s267 = scalar_lea.sflag [#allocation3], %s266
        %s268 = sand.u32 %s36, 1
        %s269 = smul.addr %s268, 128
        %s270 = scalar_lea.vmem [#allocation2], %s269
        // Predicated region
        $region37: #{tpu_custom_call.1} parent=35 // pred_check
          %p271 = pneg %p49
        $region38: #{tpu_custom_call.1} parent=35 // pred_check_branch
          %273 = sbr.rel (%p271) target = $region40
        $region39: #{tpu_custom_call.1} parent=35 // pred_region
          %274 = dma.done %s267, 2048
        $region40: #{tpu_custom_call.1} parent=35 // pred_fallthru
          _
        // Predicated region
        $region41: #{tpu_custom_call.1} parent=35 // pred_check
          %p275 = pneg %p70
        $region42: #{tpu_custom_call.1} parent=35 // pred_check_branch
          %277 = sbr.rel (%p275) target = $region44
        $region43: #{tpu_custom_call.1} parent=35 // pred_region
          %278 = dma.done [#allocation6], 1024
        $region44: #{tpu_custom_call.1} parent=35 // pred_fallthru
          _
        // Predicated region
        $region45: #{tpu_custom_call.1} parent=35 // pred_check
          %p279 = pneg %p112
        $region46: #{tpu_custom_call.1} parent=35 // pred_check_branch
          %281 = sbr.rel (%p279) target = $region48
        $region47: #{tpu_custom_call.1} parent=35 // pred_region
          %282 = dma.done [#allocation6], 1024
        $region48: #{tpu_custom_call.1} parent=35 // pred_fallthru
          _
        %s283 = sand.u32 %s36, 1
        %s284 = scalar_lea.sflag [#allocation3], %s283
        %s285 = sand.u32 %s36, 1
        %s286 = smul.addr %s285, 128
        %s287 = scalar_lea.vmem [#allocation2], %s286
        %p288 = pneg %p49
        %p289 = pneg %p46
        %p290 = pneg %p70
        %p291 = pneg %p67
        %p292 = pneg %p91
        %p293 = pneg %p88
        %p294 = pneg %p112
        %p295 = pneg %p109
        %p296 = pneg %p138
        %p297 = pneg %p135
        %s298 = sand.u32 %s125, 1
        %s299 = scalar_lea.sflag [#allocation4], %s298
        %s300 = sand.u32 %s125, 1
        %s301 = smul.addr %s300, 128
        %s302 = scalar_lea.vmem [#allocation8], %s301
        %p303 = pneg %p164
        %p304 = pneg %p161
        %s305 = sand.u32 %s28, 1
        %s306 = scalar_lea.sflag [#allocation10], %s305
        %s307 = sand.u32 %s151, 1
        %s308 = scalar_lea.vmem [#allocation9], %s307
        %p309 = pneg %p190
        %p310 = pneg %p187
        %s311 = sand.u32 %s28, 1
        %s312 = scalar_lea.sflag [#allocation10], %s311
        %s313 = sand.u32 %s177, 1
        %s314 = scalar_lea.vmem [#allocation11], %s313
        %s315 = smul.u32 32, %s28
        %s316 = smul.u32 32, %s28
        %v318 = vld [vmem:[%s270] sm:$0xf]
        %v319 = vld [vmem:[%s270 + $0x4] sm:$0xf]
        %v320 = vld [vmem:[%s270 + $0x8] sm:$0xf]
        %v321 = vld [vmem:[%s270 + $0xc] sm:$0xf]
        %v322 = vld [vmem:[%s270 + $0x10] sm:$0xf]
        %v323 = vld [vmem:[%s270 + $0x14] sm:$0xf]
        %v324 = vld [vmem:[%s270 + $0x18] sm:$0xf]
        %v325 = vld [vmem:[%s270 + $0x1c] sm:$0xf]
        %v326 = vld [vmem:[%s270 + $0x20] sm:$0xf]
        %v327 = vld [vmem:[%s270 + $0x24] sm:$0xf]
        %v328 = vld [vmem:[%s270 + $0x28] sm:$0xf]
        %v329 = vld [vmem:[%s270 + $0x2c] sm:$0xf]
        %v330 = vld [vmem:[%s270 + $0x30] sm:$0xf]
        %v331 = vld [vmem:[%s270 + $0x34] sm:$0xf]
        %v332 = vld [vmem:[%s270 + $0x38] sm:$0xf]
        %v333 = vld [vmem:[%s270 + $0x3c] sm:$0xf]
        %v334 = vld [vmem:[%s270 + $0x40] sm:$0xf]
        %v335 = vld [vmem:[%s270 + $0x44] sm:$0xf]
        %v336 = vld [vmem:[%s270 + $0x48] sm:$0xf]
        %v337 = vld [vmem:[%s270 + $0x4c] sm:$0xf]
        %v338 = vld [vmem:[%s270 + $0x50] sm:$0xf]
        %v339 = vld [vmem:[%s270 + $0x54] sm:$0xf]
        %v340 = vld [vmem:[%s270 + $0x58] sm:$0xf]
        %v341 = vld [vmem:[%s270 + $0x5c] sm:$0xf]
        %v342 = vld [vmem:[%s270 + $0x60] sm:$0xf]
        %v343 = vld [vmem:[%s270 + $0x64] sm:$0xf]
        %v344 = vld [vmem:[%s270 + $0x68] sm:$0xf]
        %v345 = vld [vmem:[%s270 + $0x6c] sm:$0xf]
        %v346 = vld [vmem:[%s270 + $0x70] sm:$0xf]
        %v347 = vld [vmem:[%s270 + $0x74] sm:$0xf]
        %v348 = vld [vmem:[%s270 + $0x78] sm:$0xf]
        %v349 = vld [vmem:[%s270 + $0x7c] sm:$0xf]
        %v350 = vld [vmem:[#allocation5] sm:$0xf]
        %v351 = vld [vmem:[#allocation5 + $0x4] sm:$0xf]
        %v352 = vld [vmem:[#allocation5 + $0x8] sm:$0xf]
        %v353 = vld [vmem:[#allocation5 + $0xc] sm:$0xf]
        %v354 = vld [vmem:[#allocation5 + $0x10] sm:$0xf]
        %v355 = vld [vmem:[#allocation5 + $0x14] sm:$0xf]
        %v356 = vld [vmem:[#allocation5 + $0x18] sm:$0xf]
        %v357 = vld [vmem:[#allocation5 + $0x1c] sm:$0xf]
        %v358 = vld [vmem:[#allocation5 + $0x20] sm:$0xf]
        %v359 = vld [vmem:[#allocation5 + $0x24] sm:$0xf]
        %v360 = vld [vmem:[#allocation5 + $0x28] sm:$0xf]
        %v361 = vld [vmem:[#allocation5 + $0x2c] sm:$0xf]
        %v362 = vld [vmem:[#allocation5 + $0x30] sm:$0xf]
        %v363 = vld [vmem:[#allocation5 + $0x34] sm:$0xf]
        %v364 = vld [vmem:[#allocation5 + $0x38] sm:$0xf]
        %v365 = vld [vmem:[#allocation5 + $0x3c] sm:$0xf]
        %v366 = vld [vmem:[%s2] sm:$0x1]
        %v368 = vlaneseq
        %v369 = vshrl.u32 %v368, 7
        %v370 = vsub.s32 0, %v369
        %v371 = vrot.slane %v366, %v370
        %v405 = vunpack.c.l.b16 %v318
        %v406 = vunpack.c.l.b16 %v319
        %v407 = vunpack.c.l.b16 %v320
        %v408 = vunpack.c.l.b16 %v321
        %v409 = vunpack.c.l.b16 %v322
        %v410 = vunpack.c.l.b16 %v323
        %v411 = vunpack.c.l.b16 %v324
        %v412 = vunpack.c.l.b16 %v325
        %v413 = vunpack.c.l.b16 %v326
        %v414 = vunpack.c.l.b16 %v327
        %v415 = vunpack.c.l.b16 %v328
        %v416 = vunpack.c.l.b16 %v329
        %v417 = vunpack.c.l.b16 %v330
        %v418 = vunpack.c.l.b16 %v331
        %v419 = vunpack.c.l.b16 %v332
        %v420 = vunpack.c.l.b16 %v333
        %v421 = vunpack.c.l.b16 %v334
        %v422 = vunpack.c.l.b16 %v335
        %v423 = vunpack.c.l.b16 %v336
        %v424 = vunpack.c.l.b16 %v337
        %v425 = vunpack.c.l.b16 %v338
        %v426 = vunpack.c.l.b16 %v339
        %v427 = vunpack.c.l.b16 %v340
        %v428 = vunpack.c.l.b16 %v341
        %v429 = vunpack.c.l.b16 %v342
        %v430 = vunpack.c.l.b16 %v343
        %v431 = vunpack.c.l.b16 %v344
        %v432 = vunpack.c.l.b16 %v345
        %v433 = vunpack.c.l.b16 %v346
        %v434 = vunpack.c.l.b16 %v347
        %v435 = vunpack.c.l.b16 %v348
        %v436 = vunpack.c.l.b16 %v349
        %v437 = vpack.c.b16 %v406, %v405
        %v438 = vpack.c.b16 %v408, %v407
        %v439 = vpack.c.b16 %v410, %v409
        %v440 = vpack.c.b16 %v412, %v411
        %v441 = vpack.c.b16 %v414, %v413
        %v442 = vpack.c.b16 %v416, %v415
        %v443 = vpack.c.b16 %v418, %v417
        %v444 = vpack.c.b16 %v420, %v419
        %v445 = vpack.c.b16 %v422, %v421
        %v446 = vpack.c.b16 %v424, %v423
        %v447 = vpack.c.b16 %v426, %v425
        %v448 = vpack.c.b16 %v428, %v427
        %v449 = vpack.c.b16 %v430, %v429
        %v450 = vpack.c.b16 %v432, %v431
        %v451 = vpack.c.b16 %v434, %v433
        %v452 = vpack.c.b16 %v436, %v435
        %v485 = vunpack.c.l.b16 %v350
        %v486 = vunpack.c.l.b16 %v351
        %v487 = vunpack.c.l.b16 %v352
        %v488 = vunpack.c.l.b16 %v353
        %v489 = vunpack.c.l.b16 %v354
        %v490 = vunpack.c.l.b16 %v355
        %v491 = vunpack.c.l.b16 %v356
        %v492 = vunpack.c.l.b16 %v357
        %v493 = vunpack.c.l.b16 %v358
        %v494 = vunpack.c.l.b16 %v359
        %v495 = vunpack.c.l.b16 %v360
        %v496 = vunpack.c.l.b16 %v361
        %v497 = vunpack.c.l.b16 %v362
        %v498 = vunpack.c.l.b16 %v363
        %v499 = vunpack.c.l.b16 %v364
        %v500 = vunpack.c.l.b16 %v365
        %v501 = vpack.c.b16 %v486, %v485
        %v502 = vpack.c.b16 %v488, %v487
        %v503 = vpack.c.b16 %v490, %v489
        %v504 = vpack.c.b16 %v492, %v491
        %v505 = vpack.c.b16 %v494, %v493
        %v506 = vpack.c.b16 %v496, %v495
        %v507 = vpack.c.b16 %v498, %v497
        %v508 = vpack.c.b16 %v500, %v499
        %517 = vmatprep.subr.bf16.mxu0 0
        %518 = vmatpush1.bf16.msra.mxu0 %v501
        %519 = vmatprep.subr.bf16.mxu0 0
        %520 = vmatpush1.bf16.msra.mxu0 %v502
        %521 = vmatprep.subr.bf16.mxu0 0
        %522 = vmatpush1.bf16.msra.mxu0 %v503
        %523 = vmatprep.subr.bf16.mxu0 0
        %524 = vmatpush1.bf16.msra.mxu0 %v504
        %525 = vmatprep.subr.bf16.mxu0 0
        %526 = vmatpush1.bf16.msra.mxu0 %v505
        %527 = vmatprep.subr.bf16.mxu0 0
        %528 = vmatpush1.bf16.msra.mxu0 %v506
        %529 = vmatprep.subr.bf16.mxu0 0
        %530 = vmatpush1.bf16.msra.mxu0 %v507
        %531 = vmatprep.subr.bf16.mxu0 0
        %532 = vmatpush1.bf16.msra.mxu0 %v508
        %533 = vmatprep.subr.bf16.mxu0 0
        %534 = vmatpush1.bf16.msra.mxu0 0
        %535 = vmatprep.subr.bf16.mxu0 0
        %536 = vmatpush1.bf16.msra.mxu0 0
        %537 = vmatprep.subr.bf16.mxu0 0
        %538 = vmatpush1.bf16.msra.mxu0 0
        %539 = vmatprep.subr.bf16.mxu0 0
        %540 = vmatpush1.bf16.msra.mxu0 0
        %541 = vmatprep.subr.bf16.mxu0 0
        %542 = vmatpush1.bf16.msra.mxu0 0
        %543 = vmatprep.subr.bf16.mxu0 0
        %544 = vmatpush1.bf16.msra.mxu0 0
        %545 = vmatprep.subr.bf16.mxu0 0
        %546 = vmatpush1.bf16.msra.mxu0 0
        %547 = vmatprep.subr.bf16.mxu0 0
        %548 = vmatpush1.bf16.msra.mxu0 0
        %549 = vmatprep.mubr.bf16.mxu0 0
        %550 = vmatmul.mubr.bf16.gmra.mrb[0].mxu0 %v437
        %v551 = vpop.f32.mrb[0].mxu0
        %v552 = vadd.f32 %v371, %v551
        %v553 = vpop.f32.mrb[0].mxu0
        %v554 = vpop.f32.mrb[0].mxu0
        %v555 = vadd.f32 %v371, %v554
        %v556 = vpop.f32.mrb[0].mxu0
        %557 = vmatprep.mubr.bf16.mxu0 0
        %558 = vmatmul.mubr.bf16.gmra.mrb[0].mxu0 %v438
        %v559 = vpop.f32.mrb[0].mxu0
        %v560 = vadd.f32 %v371, %v559
        %v561 = vpop.f32.mrb[0].mxu0
        %v562 = vpop.f32.mrb[0].mxu0
        %v563 = vadd.f32 %v371, %v562
        %v564 = vpop.f32.mrb[0].mxu0
        %565 = vmatprep.mubr.bf16.mxu0 0
        %566 = vmatmul.mubr.bf16.gmra.mrb[0].mxu0 %v439
        %v567 = vpop.f32.mrb[0].mxu0
        %v568 = vadd.f32 %v371, %v567
        %v569 = vpop.f32.mrb[0].mxu0
        %v570 = vpop.f32.mrb[0].mxu0
        %v571 = vadd.f32 %v371, %v570
        %v572 = vpop.f32.mrb[0].mxu0
        %573 = vmatprep.mubr.bf16.mxu0 0
        %574 = vmatmul.mubr.bf16.gmra.mrb[0].mxu0 %v440
        %v575 = vpop.f32.mrb[0].mxu0
        %v576 = vadd.f32 %v371, %v575
        %v577 = vpop.f32.mrb[0].mxu0
        %v578 = vpop.f32.mrb[0].mxu0
        %v579 = vadd.f32 %v371, %v578
        %v580 = vpop.f32.mrb[0].mxu0
        %581 = vmatprep.mubr.bf16.mxu0 0
        %582 = vmatmul.mubr.bf16.gmra.mrb[0].mxu0 %v441
        %v583 = vpop.f32.mrb[0].mxu0
        %v584 = vadd.f32 %v371, %v583
        %v585 = vpop.f32.mrb[0].mxu0
        %v586 = vpop.f32.mrb[0].mxu0
        %v587 = vadd.f32 %v371, %v586
        %v588 = vpop.f32.mrb[0].mxu0
        %589 = vmatprep.mubr.bf16.mxu0 0
        %590 = vmatmul.mubr.bf16.gmra.mrb[0].mxu0 %v442
        %v591 = vpop.f32.mrb[0].mxu0
        %v592 = vadd.f32 %v371, %v591
        %v593 = vpop.f32.mrb[0].mxu0
        %v594 = vpop.f32.mrb[0].mxu0
        %v595 = vadd.f32 %v371, %v594
        %v596 = vpop.f32.mrb[0].mxu0
        %597 = vmatprep.mubr.bf16.mxu0 0
        %598 = vmatmul.mubr.bf16.gmra.mrb[0].mxu0 %v443
        %v599 = vpop.f32.mrb[0].mxu0
        %v600 = vadd.f32 %v371, %v599
        %v601 = vpop.f32.mrb[0].mxu0
        %v602 = vpop.f32.mrb[0].mxu0
        %v603 = vadd.f32 %v371, %v602
        %v604 = vpop.f32.mrb[0].mxu0
        %605 = vmatprep.mubr.bf16.mxu0 0
        %606 = vmatmul.mubr.bf16.gmra.mrb[0].mxu0 %v444
        %v607 = vpop.f32.mrb[0].mxu0
        %v608 = vadd.f32 %v371, %v607
        %v609 = vpop.f32.mrb[0].mxu0
        %v610 = vpop.f32.mrb[0].mxu0
        %v611 = vadd.f32 %v371, %v610
        %v612 = vpop.f32.mrb[0].mxu0
        %613 = vmatprep.mubr.bf16.mxu0 0
        %614 = vmatmul.mubr.bf16.gmra.mrb[0].mxu0 %v445
        %v615 = vpop.f32.mrb[0].mxu0
        %v616 = vadd.f32 %v371, %v615
        %v617 = vpop.f32.mrb[0].mxu0
        %v618 = vpop.f32.mrb[0].mxu0
        %v619 = vadd.f32 %v371, %v618
        %v620 = vpop.f32.mrb[0].mxu0
        %621 = vmatprep.mubr.bf16.mxu0 0
        %622 = vmatmul.mubr.bf16.gmra.mrb[0].mxu0 %v446
        %v623 = vpop.f32.mrb[0].mxu0
        %v624 = vadd.f32 %v371, %v623
        %v625 = vpop.f32.mrb[0].mxu0
        %v626 = vpop.f32.mrb[0].mxu0
        %v627 = vadd.f32 %v371, %v626
        %v628 = vpop.f32.mrb[0].mxu0
        %629 = vmatprep.mubr.bf16.mxu0 0
        %630 = vmatmul.mubr.bf16.gmra.mrb[0].mxu0 %v447
        %v631 = vpop.f32.mrb[0].mxu0
        %v632 = vadd.f32 %v371, %v631
        %v633 = vpop.f32.mrb[0].mxu0
        %v634 = vpop.f32.mrb[0].mxu0
        %v635 = vadd.f32 %v371, %v634
        %v636 = vpop.f32.mrb[0].mxu0
        %637 = vmatprep.mubr.bf16.mxu0 0
        %638 = vmatmul.mubr.bf16.gmra.mrb[0].mxu0 %v448
        %v639 = vpop.f32.mrb[0].mxu0
        %v640 = vadd.f32 %v371, %v639
        %v641 = vpop.f32.mrb[0].mxu0
        %v642 = vpop.f32.mrb[0].mxu0
        %v643 = vadd.f32 %v371, %v642
        %v644 = vpop.f32.mrb[0].mxu0
        %645 = vmatprep.mubr.bf16.mxu0 0
        %646 = vmatmul.mubr.bf16.gmra.mrb[0].mxu0 %v449
        %v647 = vpop.f32.mrb[0].mxu0
        %v648 = vadd.f32 %v371, %v647
        %v649 = vpop.f32.mrb[0].mxu0
        %v650 = vpop.f32.mrb[0].mxu0
        %v651 = vadd.f32 %v371, %v650
        %v652 = vpop.f32.mrb[0].mxu0
        %653 = vmatprep.mubr.bf16.mxu0 0
        %654 = vmatmul.mubr.bf16.gmra.mrb[0].mxu0 %v450
        %v655 = vpop.f32.mrb[0].mxu0
        %v656 = vadd.f32 %v371, %v655
        %v657 = vpop.f32.mrb[0].mxu0
        %v658 = vpop.f32.mrb[0].mxu0
        %v659 = vadd.f32 %v371, %v658
        %v660 = vpop.f32.mrb[0].mxu0
        %661 = vmatprep.mubr.bf16.mxu0 0
        %662 = vmatmul.mubr.bf16.gmra.mrb[0].mxu0 %v451
        %v663 = vpop.f32.mrb[0].mxu0
        %v664 = vadd.f32 %v371, %v663
        %v665 = vpop.f32.mrb[0].mxu0
        %v666 = vpop.f32.mrb[0].mxu0
        %v667 = vadd.f32 %v371, %v666
        %v668 = vpop.f32.mrb[0].mxu0
        %669 = vmatprep.mubr.bf16.mxu0 0
        %670 = vmatmul.mubr.bf16.gmra.mrb[0].mxu0 %v452
        %v671 = vpop.f32.mrb[0].mxu0
        %v672 = vadd.f32 %v371, %v671
        %v673 = vpop.f32.mrb[0].mxu0
        %v674 = vpop.f32.mrb[0].mxu0
        %v675 = vadd.f32 %v371, %v674
        %v676 = vpop.f32.mrb[0].mxu0
        %677 = vdwg.mxu0
        %vm678 = vcmp.ge.f32.partialorder %v552, 0.0
        %vm679 = vcmp.ge.f32.partialorder %v555, 0.0
        %vm680 = vcmp.ge.f32.partialorder %v560, 0.0
        %vm681 = vcmp.ge.f32.partialorder %v563, 0.0
        %vm682 = vcmp.ge.f32.partialorder %v568, 0.0
        %vm683 = vcmp.ge.f32.partialorder %v571, 0.0
        %vm684 = vcmp.ge.f32.partialorder %v576, 0.0
        %vm685 = vcmp.ge.f32.partialorder %v579, 0.0
        %vm686 = vcmp.ge.f32.partialorder %v584, 0.0
        %vm687 = vcmp.ge.f32.partialorder %v587, 0.0
        %vm688 = vcmp.ge.f32.partialorder %v592, 0.0
        %vm689 = vcmp.ge.f32.partialorder %v595, 0.0
        %vm690 = vcmp.ge.f32.partialorder %v600, 0.0
        %vm691 = vcmp.ge.f32.partialorder %v603, 0.0
        %vm692 = vcmp.ge.f32.partialorder %v608, 0.0
        %vm693 = vcmp.ge.f32.partialorder %v611, 0.0
        %vm694 = vcmp.ge.f32.partialorder %v616, 0.0
        %vm695 = vcmp.ge.f32.partialorder %v619, 0.0
        %vm696 = vcmp.ge.f32.partialorder %v624, 0.0
        %vm697 = vcmp.ge.f32.partialorder %v627, 0.0
        %vm698 = vcmp.ge.f32.partialorder %v632, 0.0
        %vm699 = vcmp.ge.f32.partialorder %v635, 0.0
        %vm700 = vcmp.ge.f32.partialorder %v640, 0.0
        %vm701 = vcmp.ge.f32.partialorder %v643, 0.0
        %vm702 = vcmp.ge.f32.partialorder %v648, 0.0
        %vm703 = vcmp.ge.f32.partialorder %v651, 0.0
        %vm704 = vcmp.ge.f32.partialorder %v656, 0.0
        %vm705 = vcmp.ge.f32.partialorder %v659, 0.0
        %vm706 = vcmp.ge.f32.partialorder %v664, 0.0
        %vm707 = vcmp.ge.f32.partialorder %v667, 0.0
        %vm708 = vcmp.ge.f32.partialorder %v672, 0.0
        %vm709 = vcmp.ge.f32.partialorder %v675, 0.0
        %v710 = vmul.f32 %v552, 0.2
        %v711 = vmul.f32 %v555, 0.2
        %v712 = vmul.f32 %v560, 0.2
        %v713 = vmul.f32 %v563, 0.2
        %v714 = vmul.f32 %v568, 0.2
        %v715 = vmul.f32 %v571, 0.2
        %v716 = vmul.f32 %v576, 0.2
        %v717 = vmul.f32 %v579, 0.2
        %v718 = vmul.f32 %v584, 0.2
        %v719 = vmul.f32 %v587, 0.2
        %v720 = vmul.f32 %v592, 0.2
        %v721 = vmul.f32 %v595, 0.2
        %v722 = vmul.f32 %v600, 0.2
        %v723 = vmul.f32 %v603, 0.2
        %v724 = vmul.f32 %v608, 0.2
        %v725 = vmul.f32 %v611, 0.2
        %v726 = vmul.f32 %v616, 0.2
        %v727 = vmul.f32 %v619, 0.2
        %v728 = vmul.f32 %v624, 0.2
        %v729 = vmul.f32 %v627, 0.2
        %v730 = vmul.f32 %v632, 0.2
        %v731 = vmul.f32 %v635, 0.2
        %v732 = vmul.f32 %v640, 0.2
        %v733 = vmul.f32 %v643, 0.2
        %v734 = vmul.f32 %v648, 0.2
        %v735 = vmul.f32 %v651, 0.2
        %v736 = vmul.f32 %v656, 0.2
        %v737 = vmul.f32 %v659, 0.2
        %v738 = vmul.f32 %v664, 0.2
        %v739 = vmul.f32 %v667, 0.2
        %v740 = vmul.f32 %v672, 0.2
        %v741 = vmul.f32 %v675, 0.2
        %v742 = vsel %vm678, %v552, %v710
        %v743 = vsel %vm679, %v555, %v711
        %v744 = vsel %vm680, %v560, %v712
        %v745 = vsel %vm681, %v563, %v713
        %v746 = vsel %vm682, %v568, %v714
        %v747 = vsel %vm683, %v571, %v715
        %v748 = vsel %vm684, %v576, %v716
        %v749 = vsel %vm685, %v579, %v717
        %v750 = vsel %vm686, %v584, %v718
        %v751 = vsel %vm687, %v587, %v719
        %v752 = vsel %vm688, %v592, %v720
        %v753 = vsel %vm689, %v595, %v721
        %v754 = vsel %vm690, %v600, %v722
        %v755 = vsel %vm691, %v603, %v723
        %v756 = vsel %vm692, %v608, %v724
        %v757 = vsel %vm693, %v611, %v725
        %v758 = vsel %vm694, %v616, %v726
        %v759 = vsel %vm695, %v619, %v727
        %v760 = vsel %vm696, %v624, %v728
        %v761 = vsel %vm697, %v627, %v729
        %v762 = vsel %vm698, %v632, %v730
        %v763 = vsel %vm699, %v635, %v731
        %v764 = vsel %vm700, %v640, %v732
        %v765 = vsel %vm701, %v643, %v733
        %v766 = vsel %vm702, %v648, %v734
        %v767 = vsel %vm703, %v651, %v735
        %v768 = vsel %vm704, %v656, %v736
        %v769 = vsel %vm705, %v659, %v737
        %v770 = vsel %vm706, %v664, %v738
        %v771 = vsel %vm707, %v667, %v739
        %v772 = vsel %vm708, %v672, %v740
        %v773 = vsel %vm709, %v675, %v741
        %v774 = vpack.c.bf16 %v743, %v742
        %v775 = vpack.c.bf16 %v745, %v744
        %v776 = vpack.c.bf16 %v747, %v746
        %v777 = vpack.c.bf16 %v749, %v748
        %v778 = vpack.c.bf16 %v751, %v750
        %v779 = vpack.c.bf16 %v753, %v752
        %v780 = vpack.c.bf16 %v755, %v754
        %v781 = vpack.c.bf16 %v757, %v756
        %v782 = vpack.c.bf16 %v759, %v758
        %v783 = vpack.c.bf16 %v761, %v760
        %v784 = vpack.c.bf16 %v763, %v762
        %v785 = vpack.c.bf16 %v765, %v764
        %v786 = vpack.c.bf16 %v767, %v766
        %v787 = vpack.c.bf16 %v769, %v768
        %v788 = vpack.c.bf16 %v771, %v770
        %v789 = vpack.c.bf16 %v773, %v772
        %v790 = vld [vmem:[#allocation7] sm:$0xf]
        %v791 = vld [vmem:[#allocation7 + $0x4] sm:$0xf]
        %v792 = vld [vmem:[#allocation7 + $0x8] sm:$0xf]
        %v793 = vld [vmem:[#allocation7 + $0xc] sm:$0xf]
        %v794 = vld [vmem:[#allocation7 + $0x10] sm:$0xf]
        %v795 = vld [vmem:[#allocation7 + $0x14] sm:$0xf]
        %v796 = vld [vmem:[#allocation7 + $0x18] sm:$0xf]
        %v797 = vld [vmem:[#allocation7 + $0x1c] sm:$0xf]
        %v798 = vld [vmem:[#allocation7 + $0x20] sm:$0xf]
        %v799 = vld [vmem:[#allocation7 + $0x24] sm:$0xf]
        %v800 = vld [vmem:[#allocation7 + $0x28] sm:$0xf]
        %v801 = vld [vmem:[#allocation7 + $0x2c] sm:$0xf]
        %v802 = vld [vmem:[#allocation7 + $0x30] sm:$0xf]
        %v803 = vld [vmem:[#allocation7 + $0x34] sm:$0xf]
        %v804 = vld [vmem:[#allocation7 + $0x38] sm:$0xf]
        %v805 = vld [vmem:[#allocation7 + $0x3c] sm:$0xf]
        %v822 = vunpack.c.l.b16 %v790
        %v823 = vunpack.c.l.b16 %v791
        %v824 = vunpack.c.l.b16 %v792
        %v825 = vunpack.c.l.b16 %v793
        %v826 = vunpack.c.l.b16 %v794
        %v827 = vunpack.c.l.b16 %v795
        %v828 = vunpack.c.l.b16 %v796
        %v829 = vunpack.c.l.b16 %v797
        %v830 = vunpack.c.l.b16 %v798
        %v831 = vunpack.c.l.b16 %v799
        %v832 = vunpack.c.l.b16 %v800
        %v833 = vunpack.c.l.b16 %v801
        %v834 = vunpack.c.l.b16 %v802
        %v835 = vunpack.c.l.b16 %v803
        %v836 = vunpack.c.l.b16 %v804
        %v837 = vunpack.c.l.b16 %v805
        %v838 = vpack.c.b16 %v823, %v822
        %v839 = vpack.c.b16 %v825, %v824
        %v840 = vpack.c.b16 %v827, %v826
        %v841 = vpack.c.b16 %v829, %v828
        %v842 = vpack.c.b16 %v831, %v830
        %v843 = vpack.c.b16 %v833, %v832
        %v844 = vpack.c.b16 %v835, %v834
        %v845 = vpack.c.b16 %v837, %v836
        %854 = vmatprep.subr.bf16.mxu0 0
        %855 = vmatpush1.bf16.msra.mxu0 %v838
        %856 = vmatprep.subr.bf16.mxu0 0
        %857 = vmatpush1.bf16.msra.mxu0 %v839
        %858 = vmatprep.subr.bf16.mxu0 0
        %859 = vmatpush1.bf16.msra.mxu0 %v840
        %860 = vmatprep.subr.bf16.mxu0 0
        %861 = vmatpush1.bf16.msra.mxu0 %v841
        %862 = vmatprep.subr.bf16.mxu0 0
        %863 = vmatpush1.bf16.msra.mxu0 %v842
        %864 = vmatprep.subr.bf16.mxu0 0
        %865 = vmatpush1.bf16.msra.mxu0 %v843
        %866 = vmatprep.subr.bf16.mxu0 0
        %867 = vmatpush1.bf16.msra.mxu0 %v844
        %868 = vmatprep.subr.bf16.mxu0 0
        %869 = vmatpush1.bf16.msra.mxu0 %v845
        %870 = vmatprep.subr.bf16.mxu0 0
        %871 = vmatpush1.bf16.msra.mxu0 0
        %872 = vmatprep.subr.bf16.mxu0 0
        %873 = vmatpush1.bf16.msra.mxu0 0
        %874 = vmatprep.subr.bf16.mxu0 0
        %875 = vmatpush1.bf16.msra.mxu0 0
        %876 = vmatprep.subr.bf16.mxu0 0
        %877 = vmatpush1.bf16.msra.mxu0 0
        %878 = vmatprep.subr.bf16.mxu0 0
        %879 = vmatpush1.bf16.msra.mxu0 0
        %880 = vmatprep.subr.bf16.mxu0 0
        %881 = vmatpush1.bf16.msra.mxu0 0
        %882 = vmatprep.subr.bf16.mxu0 0
        %883 = vmatpush1.bf16.msra.mxu0 0
        %884 = vmatprep.subr.bf16.mxu0 0
        %885 = vmatpush1.bf16.msra.mxu0 0
        %886 = vmatprep.mubr.bf16.mxu0 0
        %887 = vmatmul.mubr.bf16.gmra.mrb[0].mxu0 %v774
        %v888 = vpop.f32.mrb[0].mxu0
        %v889 = vadd.f32 0.0, %v888
        %v890 = vpop.f32.mrb[0].mxu0
        %v891 = vpop.f32.mrb[0].mxu0
        %v892 = vadd.f32 0.0, %v891
        %v893 = vpop.f32.mrb[0].mxu0
        %894 = vmatprep.mubr.bf16.mxu0 0
        %895 = vmatmul.mubr.bf16.gmra.mrb[0].mxu0 %v775
        %v896 = vpop.f32.mrb[0].mxu0
        %v897 = vadd.f32 0.0, %v896
        %v898 = vpop.f32.mrb[0].mxu0
        %v899 = vpop.f32.mrb[0].mxu0
        %v900 = vadd.f32 0.0, %v899
        %v901 = vpop.f32.mrb[0].mxu0
        %902 = vmatprep.mubr.bf16.mxu0 0
        %903 = vmatmul.mubr.bf16.gmra.mrb[0].mxu0 %v776
        %v904 = vpop.f32.mrb[0].mxu0
        %v905 = vadd.f32 0.0, %v904
        %v906 = vpop.f32.mrb[0].mxu0
        %v907 = vpop.f32.mrb[0].mxu0
        %v908 = vadd.f32 0.0, %v907
        %v909 = vpop.f32.mrb[0].mxu0
        %910 = vmatprep.mubr.bf16.mxu0 0
        %911 = vmatmul.mubr.bf16.gmra.mrb[0].mxu0 %v777
        %v912 = vpop.f32.mrb[0].mxu0
        %v913 = vadd.f32 0.0, %v912
        %v914 = vpop.f32.mrb[0].mxu0
        %v915 = vpop.f32.mrb[0].mxu0
        %v916 = vadd.f32 0.0, %v915
        %v917 = vpop.f32.mrb[0].mxu0
        %918 = vmatprep.mubr.bf16.mxu0 0
        %919 = vmatmul.mubr.bf16.gmra.mrb[0].mxu0 %v778
        %v920 = vpop.f32.mrb[0].mxu0
        %v921 = vadd.f32 0.0, %v920
        %v922 = vpop.f32.mrb[0].mxu0
        %v923 = vpop.f32.mrb[0].mxu0
        %v924 = vadd.f32 0.0, %v923
        %v925 = vpop.f32.mrb[0].mxu0
        %926 = vmatprep.mubr.bf16.mxu0 0
        %927 = vmatmul.mubr.bf16.gmra.mrb[0].mxu0 %v779
        %v928 = vpop.f32.mrb[0].mxu0
        %v929 = vadd.f32 0.0, %v928
        %v930 = vpop.f32.mrb[0].mxu0
        %v931 = vpop.f32.mrb[0].mxu0
        %v932 = vadd.f32 0.0, %v931
        %v933 = vpop.f32.mrb[0].mxu0
        %934 = vmatprep.mubr.bf16.mxu0 0
        %935 = vmatmul.mubr.bf16.gmra.mrb[0].mxu0 %v780
        %v936 = vpop.f32.mrb[0].mxu0
        %v937 = vadd.f32 0.0, %v936
        %v938 = vpop.f32.mrb[0].mxu0
        %v939 = vpop.f32.mrb[0].mxu0
        %v940 = vadd.f32 0.0, %v939
        %v941 = vpop.f32.mrb[0].mxu0
        %942 = vmatprep.mubr.bf16.mxu0 0
        %943 = vmatmul.mubr.bf16.gmra.mrb[0].mxu0 %v781
        %v944 = vpop.f32.mrb[0].mxu0
        %v945 = vadd.f32 0.0, %v944
        %v946 = vpop.f32.mrb[0].mxu0
        %v947 = vpop.f32.mrb[0].mxu0
        %v948 = vadd.f32 0.0, %v947
        %v949 = vpop.f32.mrb[0].mxu0
        %950 = vmatprep.mubr.bf16.mxu0 0
        %951 = vmatmul.mubr.bf16.gmra.mrb[0].mxu0 %v782
        %v952 = vpop.f32.mrb[0].mxu0
        %v953 = vadd.f32 0.0, %v952
        %v954 = vpop.f32.mrb[0].mxu0
        %v955 = vpop.f32.mrb[0].mxu0
        %v956 = vadd.f32 0.0, %v955
        %v957 = vpop.f32.mrb[0].mxu0
        %958 = vmatprep.mubr.bf16.mxu0 0
        %959 = vmatmul.mubr.bf16.gmra.mrb[0].mxu0 %v783
        %v960 = vpop.f32.mrb[0].mxu0
        %v961 = vadd.f32 0.0, %v960
        %v962 = vpop.f32.mrb[0].mxu0
        %v963 = vpop.f32.mrb[0].mxu0
        %v964 = vadd.f32 0.0, %v963
        %v965 = vpop.f32.mrb[0].mxu0
        %966 = vmatprep.mubr.bf16.mxu0 0
        %967 = vmatmul.mubr.bf16.gmra.mrb[0].mxu0 %v784
        %v968 = vpop.f32.mrb[0].mxu0
        %v969 = vadd.f32 0.0, %v968
        %v970 = vpop.f32.mrb[0].mxu0
        %v971 = vpop.f32.mrb[0].mxu0
        %v972 = vadd.f32 0.0, %v971
        %v973 = vpop.f32.mrb[0].mxu0
        %974 = vmatprep.mubr.bf16.mxu0 0
        %975 = vmatmul.mubr.bf16.gmra.mrb[0].mxu0 %v785
        %v976 = vpop.f32.mrb[0].mxu0
        %v977 = vadd.f32 0.0, %v976
        %v978 = vpop.f32.mrb[0].mxu0
        %v979 = vpop.f32.mrb[0].mxu0
        %v980 = vadd.f32 0.0, %v979
        %v981 = vpop.f32.mrb[0].mxu0
        %982 = vmatprep.mubr.bf16.mxu0 0
        %983 = vmatmul.mubr.bf16.gmra.mrb[0].mxu0 %v786
        %v984 = vpop.f32.mrb[0].mxu0
        %v985 = vadd.f32 0.0, %v984
        %v986 = vpop.f32.mrb[0].mxu0
        %v987 = vpop.f32.mrb[0].mxu0
        %v988 = vadd.f32 0.0, %v987
        %v989 = vpop.f32.mrb[0].mxu0
        %990 = vmatprep.mubr.bf16.mxu0 0
        %991 = vmatmul.mubr.bf16.gmra.mrb[0].mxu0 %v787
        %v992 = vpop.f32.mrb[0].mxu0
        %v993 = vadd.f32 0.0, %v992
        %v994 = vpop.f32.mrb[0].mxu0
        %v995 = vpop.f32.mrb[0].mxu0
        %v996 = vadd.f32 0.0, %v995
        %v997 = vpop.f32.mrb[0].mxu0
        %998 = vmatprep.mubr.bf16.mxu0 0
        %999 = vmatmul.mubr.bf16.gmra.mrb[0].mxu0 %v788
        %v1000 = vpop.f32.mrb[0].mxu0
        %v1001 = vadd.f32 0.0, %v1000
        %v1002 = vpop.f32.mrb[0].mxu0
        %v1003 = vpop.f32.mrb[0].mxu0
        %v1004 = vadd.f32 0.0, %v1003
        %v1005 = vpop.f32.mrb[0].mxu0
        %1006 = vmatprep.mubr.bf16.mxu0 0
        %1007 = vmatmul.mubr.bf16.gmra.mrb[0].mxu0 %v789
        %v1008 = vpop.f32.mrb[0].mxu0
        %v1009 = vadd.f32 0.0, %v1008
        %v1010 = vpop.f32.mrb[0].mxu0
        %v1011 = vpop.f32.mrb[0].mxu0
        %v1012 = vadd.f32 0.0, %v1011
        %v1013 = vpop.f32.mrb[0].mxu0
        %1014 = vdwg.mxu0
        %v1015 = vpack.c.bf16 %v892, %v889
        %v1016 = vpack.c.bf16 %v900, %v897
        %v1017 = vpack.c.bf16 %v908, %v905
        %v1018 = vpack.c.bf16 %v916, %v913
        %v1019 = vpack.c.bf16 %v924, %v921
        %v1020 = vpack.c.bf16 %v932, %v929
        %v1021 = vpack.c.bf16 %v940, %v937
        %v1022 = vpack.c.bf16 %v948, %v945
        %v1023 = vpack.c.bf16 %v956, %v953
        %v1024 = vpack.c.bf16 %v964, %v961
        %v1025 = vpack.c.bf16 %v972, %v969
        %v1026 = vpack.c.bf16 %v980, %v977
        %v1027 = vpack.c.bf16 %v988, %v985
        %v1028 = vpack.c.bf16 %v996, %v993
        %v1029 = vpack.c.bf16 %v1004, %v1001
        %v1030 = vpack.c.bf16 %v1012, %v1009
        %v1047 = vunpack.c.l.b16 %v1015
        %v1048 = vunpack.c.h.b16 %v1015
        %v1049 = vunpack.c.l.b16 %v1016
        %v1050 = vunpack.c.h.b16 %v1016
        %v1051 = vunpack.c.l.b16 %v1017
        %v1052 = vunpack.c.h.b16 %v1017
        %v1053 = vunpack.c.l.b16 %v1018
        %v1054 = vunpack.c.h.b16 %v1018
        %v1055 = vunpack.c.l.b16 %v1019
        %v1056 = vunpack.c.h.b16 %v1019
        %v1057 = vunpack.c.l.b16 %v1020
        %v1058 = vunpack.c.h.b16 %v1020
        %v1059 = vunpack.c.l.b16 %v1021
        %v1060 = vunpack.c.h.b16 %v1021
        %v1061 = vunpack.c.l.b16 %v1022
        %v1062 = vunpack.c.h.b16 %v1022
        %v1063 = vunpack.c.l.b16 %v1023
        %v1064 = vunpack.c.h.b16 %v1023
        %v1065 = vunpack.c.l.b16 %v1024
        %v1066 = vunpack.c.h.b16 %v1024
        %v1067 = vunpack.c.l.b16 %v1025
        %v1068 = vunpack.c.h.b16 %v1025
        %v1069 = vunpack.c.l.b16 %v1026
        %v1070 = vunpack.c.h.b16 %v1026
        %v1071 = vunpack.c.l.b16 %v1027
        %v1072 = vunpack.c.h.b16 %v1027
        %v1073 = vunpack.c.l.b16 %v1028
        %v1074 = vunpack.c.h.b16 %v1028
        %v1075 = vunpack.c.l.b16 %v1029
        %v1076 = vunpack.c.h.b16 %v1029
        %v1077 = vunpack.c.l.b16 %v1030
        %v1078 = vunpack.c.h.b16 %v1030
        %v1079 = vpack.c.b16 %v1047, %v1047
        %v1080 = vpack.c.b16 %v1048, %v1048
        %v1081 = vpack.c.b16 %v1049, %v1049
        %v1082 = vpack.c.b16 %v1050, %v1050
        %v1083 = vpack.c.b16 %v1051, %v1051
        %v1084 = vpack.c.b16 %v1052, %v1052
        %v1085 = vpack.c.b16 %v1053, %v1053
        %v1086 = vpack.c.b16 %v1054, %v1054
        %v1087 = vpack.c.b16 %v1055, %v1055
        %v1088 = vpack.c.b16 %v1056, %v1056
        %v1089 = vpack.c.b16 %v1057, %v1057
        %v1090 = vpack.c.b16 %v1058, %v1058
        %v1091 = vpack.c.b16 %v1059, %v1059
        %v1092 = vpack.c.b16 %v1060, %v1060
        %v1093 = vpack.c.b16 %v1061, %v1061
        %v1094 = vpack.c.b16 %v1062, %v1062
        %v1095 = vpack.c.b16 %v1063, %v1063
        %v1096 = vpack.c.b16 %v1064, %v1064
        %v1097 = vpack.c.b16 %v1065, %v1065
        %v1098 = vpack.c.b16 %v1066, %v1066
        %v1099 = vpack.c.b16 %v1067, %v1067
        %v1100 = vpack.c.b16 %v1068, %v1068
        %v1101 = vpack.c.b16 %v1069, %v1069
        %v1102 = vpack.c.b16 %v1070, %v1070
        %v1103 = vpack.c.b16 %v1071, %v1071
        %v1104 = vpack.c.b16 %v1072, %v1072
        %v1105 = vpack.c.b16 %v1073, %v1073
        %v1106 = vpack.c.b16 %v1074, %v1074
        %v1107 = vpack.c.b16 %v1075, %v1075
        %v1108 = vpack.c.b16 %v1076, %v1076
        %v1109 = vpack.c.b16 %v1077, %v1077
        %v1110 = vpack.c.b16 %v1078, %v1078
        %1143 = vst [vmem:[%s302] sm:$0xf] %v1079
        %1144 = vst [vmem:[%s302 + $0x4] sm:$0xf] %v1080
        %1145 = vst [vmem:[%s302 + $0x8] sm:$0xf] %v1081
        %1146 = vst [vmem:[%s302 + $0xc] sm:$0xf] %v1082
        %1147 = vst [vmem:[%s302 + $0x10] sm:$0xf] %v1083
        %1148 = vst [vmem:[%s302 + $0x14] sm:$0xf] %v1084
        %1149 = vst [vmem:[%s302 + $0x18] sm:$0xf] %v1085
        %1150 = vst [vmem:[%s302 + $0x1c] sm:$0xf] %v1086
        %1151 = vst [vmem:[%s302 + $0x20] sm:$0xf] %v1087
        %1152 = vst [vmem:[%s302 + $0x24] sm:$0xf] %v1088
        %1153 = vst [vmem:[%s302 + $0x28] sm:$0xf] %v1089
        %1154 = vst [vmem:[%s302 + $0x2c] sm:$0xf] %v1090
        %1155 = vst [vmem:[%s302 + $0x30] sm:$0xf] %v1091
        %1156 = vst [vmem:[%s302 + $0x34] sm:$0xf] %v1092
        %1157 = vst [vmem:[%s302 + $0x38] sm:$0xf] %v1093
        %1158 = vst [vmem:[%s302 + $0x3c] sm:$0xf] %v1094
        %1159 = vst [vmem:[%s302 + $0x40] sm:$0xf] %v1095
        %1160 = vst [vmem:[%s302 + $0x44] sm:$0xf] %v1096
        %1161 = vst [vmem:[%s302 + $0x48] sm:$0xf] %v1097
        %1162 = vst [vmem:[%s302 + $0x4c] sm:$0xf] %v1098
        %1163 = vst [vmem:[%s302 + $0x50] sm:$0xf] %v1099
        %1164 = vst [vmem:[%s302 + $0x54] sm:$0xf] %v1100
        %1165 = vst [vmem:[%s302 + $0x58] sm:$0xf] %v1101
        %1166 = vst [vmem:[%s302 + $0x5c] sm:$0xf] %v1102
        %1167 = vst [vmem:[%s302 + $0x60] sm:$0xf] %v1103
        %1168 = vst [vmem:[%s302 + $0x64] sm:$0xf] %v1104
        %1169 = vst [vmem:[%s302 + $0x68] sm:$0xf] %v1105
        %1170 = vst [vmem:[%s302 + $0x6c] sm:$0xf] %v1106
        %1171 = vst [vmem:[%s302 + $0x70] sm:$0xf] %v1107
        %1172 = vst [vmem:[%s302 + $0x74] sm:$0xf] %v1108
        %1173 = vst [vmem:[%s302 + $0x78] sm:$0xf] %v1109
        %1174 = vst [vmem:[%s302 + $0x7c] sm:$0xf] %v1110
        %s1175 = smul.u32 %s28, 256
        %v1176 = vlaneseq
        %v1177 = vshrl.u32 %v1176, 7
        %v1178 = vadd.s32 %v1177, 8
        %v1179 = vadd.s32 %v1177, 16
        %v1180 = vadd.s32 %v1177, 24
        %v1181 = vadd.s32 %v1177, 32
        %v1182 = vadd.s32 %v1177, 40
        %v1183 = vadd.s32 %v1177, 48
        %v1184 = vadd.s32 %v1177, 56
        %v1185 = vadd.s32 %v1177, 64
        %v1186 = vadd.s32 %v1177, 72
        %v1187 = vadd.s32 %v1177, 80
        %v1188 = vadd.s32 %v1177, 88
        %v1189 = vadd.s32 %v1177, 96
        %v1190 = vadd.s32 %v1177, 104
        %v1191 = vadd.s32 %v1177, 112
        %v1192 = vadd.s32 %v1177, 120
        %v1193 = vadd.s32 %v1177, 128
        %v1194 = vadd.s32 %v1177, 136
        %v1195 = vadd.s32 %v1177, 144
        %v1196 = vadd.s32 %v1177, 152
        %v1197 = vadd.s32 %v1177, 160
        %v1198 = vadd.s32 %v1177, 168
        %v1199 = vadd.s32 %v1177, 176
        %v1200 = vadd.s32 %v1177, 184
        %v1201 = vadd.s32 %v1177, 192
        %v1202 = vadd.s32 %v1177, 200
        %v1203 = vadd.s32 %v1177, 208
        %v1204 = vadd.s32 %v1177, 216
        %v1205 = vadd.s32 %v1177, 224
        %v1206 = vadd.s32 %v1177, 232
        %v1207 = vadd.s32 %v1177, 240
        %v1208 = vadd.s32 %v1177, 248
        %v1209 = vstv %s1175
        %v1210 = vadd.s32 %v1209, %v1177
        %v1211 = vadd.s32 %v1209, %v1178
        %v1212 = vadd.s32 %v1209, %v1179
        %v1213 = vadd.s32 %v1209, %v1180
        %v1214 = vadd.s32 %v1209, %v1181
        %v1215 = vadd.s32 %v1209, %v1182
        %v1216 = vadd.s32 %v1209, %v1183
        %v1217 = vadd.s32 %v1209, %v1184
        %v1218 = vadd.s32 %v1209, %v1185
        %v1219 = vadd.s32 %v1209, %v1186
        %v1220 = vadd.s32 %v1209, %v1187
        %v1221 = vadd.s32 %v1209, %v1188
        %v1222 = vadd.s32 %v1209, %v1189
        %v1223 = vadd.s32 %v1209, %v1190
        %v1224 = vadd.s32 %v1209, %v1191
        %v1225 = vadd.s32 %v1209, %v1192
        %v1226 = vadd.s32 %v1209, %v1193
        %v1227 = vadd.s32 %v1209, %v1194
        %v1228 = vadd.s32 %v1209, %v1195
        %v1229 = vadd.s32 %v1209, %v1196
        %v1230 = vadd.s32 %v1209, %v1197
        %v1231 = vadd.s32 %v1209, %v1198
        %v1232 = vadd.s32 %v1209, %v1199
        %v1233 = vadd.s32 %v1209, %v1200
        %v1234 = vadd.s32 %v1209, %v1201
        %v1235 = vadd.s32 %v1209, %v1202
        %v1236 = vadd.s32 %v1209, %v1203
        %v1237 = vadd.s32 %v1209, %v1204
        %v1238 = vadd.s32 %v1209, %v1205
        %v1239 = vadd.s32 %v1209, %v1206
        %v1240 = vadd.s32 %v1209, %v1207
        %v1241 = vadd.s32 %v1209, %v1208
        %vm1242 = vcmp.lt.s32.totalorder %v1210, 512
        %vm1243 = vcmp.lt.s32.totalorder %v1211, 512
        %vm1244 = vcmp.lt.s32.totalorder %v1212, 512
        %vm1245 = vcmp.lt.s32.totalorder %v1213, 512
        %vm1246 = vcmp.lt.s32.totalorder %v1214, 512
        %vm1247 = vcmp.lt.s32.totalorder %v1215, 512
        %vm1248 = vcmp.lt.s32.totalorder %v1216, 512
        %vm1249 = vcmp.lt.s32.totalorder %v1217, 512
        %vm1250 = vcmp.lt.s32.totalorder %v1218, 512
        %vm1251 = vcmp.lt.s32.totalorder %v1219, 512
        %vm1252 = vcmp.lt.s32.totalorder %v1220, 512
        %vm1253 = vcmp.lt.s32.totalorder %v1221, 512
        %vm1254 = vcmp.lt.s32.totalorder %v1222, 512
        %vm1255 = vcmp.lt.s32.totalorder %v1223, 512
        %vm1256 = vcmp.lt.s32.totalorder %v1224, 512
        %vm1257 = vcmp.lt.s32.totalorder %v1225, 512
        %vm1258 = vcmp.lt.s32.totalorder %v1226, 512
        %vm1259 = vcmp.lt.s32.totalorder %v1227, 512
        %vm1260 = vcmp.lt.s32.totalorder %v1228, 512
        %vm1261 = vcmp.lt.s32.totalorder %v1229, 512
        %vm1262 = vcmp.lt.s32.totalorder %v1230, 512
        %vm1263 = vcmp.lt.s32.totalorder %v1231, 512
        %vm1264 = vcmp.lt.s32.totalorder %v1232, 512
        %vm1265 = vcmp.lt.s32.totalorder %v1233, 512
        %vm1266 = vcmp.lt.s32.totalorder %v1234, 512
        %vm1267 = vcmp.lt.s32.totalorder %v1235, 512
        %vm1268 = vcmp.lt.s32.totalorder %v1236, 512
        %vm1269 = vcmp.lt.s32.totalorder %v1237, 512
        %vm1270 = vcmp.lt.s32.totalorder %v1238, 512
        %vm1271 = vcmp.lt.s32.totalorder %v1239, 512
        %vm1272 = vcmp.lt.s32.totalorder %v1240, 512
        %vm1273 = vcmp.lt.s32.totalorder %v1241, 512
        %v1274 = vsel %vm1242, 1, 0
        %v1275 = vsel %vm1243, 1, 0
        %v1276 = vsel %vm1244, 1, 0
        %v1277 = vsel %vm1245, 1, 0
        %v1278 = vsel %vm1246, 1, 0
        %v1279 = vsel %vm1247, 1, 0
        %v1280 = vsel %vm1248, 1, 0
        %v1281 = vsel %vm1249, 1, 0
        %v1282 = vsel %vm1250, 1, 0
        %v1283 = vsel %vm1251, 1, 0
        %v1284 = vsel %vm1252, 1, 0
        %v1285 = vsel %vm1253, 1, 0
        %v1286 = vsel %vm1254, 1, 0
        %v1287 = vsel %vm1255, 1, 0
        %v1288 = vsel %vm1256, 1, 0
        %v1289 = vsel %vm1257, 1, 0
        %v1290 = vsel %vm1258, 1, 0
        %v1291 = vsel %vm1259, 1, 0
        %v1292 = vsel %vm1260, 1, 0
        %v1293 = vsel %vm1261, 1, 0
        %v1294 = vsel %vm1262, 1, 0
        %v1295 = vsel %vm1263, 1, 0
        %v1296 = vsel %vm1264, 1, 0
        %v1297 = vsel %vm1265, 1, 0
        %v1298 = vsel %vm1266, 1, 0
        %v1299 = vsel %vm1267, 1, 0
        %v1300 = vsel %vm1268, 1, 0
        %v1301 = vsel %vm1269, 1, 0
        %v1302 = vsel %vm1270, 1, 0
        %v1303 = vsel %vm1271, 1, 0
        %v1304 = vsel %vm1272, 1, 0
        %v1305 = vsel %vm1273, 1, 0
        %v1306 = vcvt.s32.f32 %v1274
        %v1307 = vcvt.s32.f32 %v1275
        %v1308 = vcvt.s32.f32 %v1276
        %v1309 = vcvt.s32.f32 %v1277
        %v1310 = vcvt.s32.f32 %v1278
        %v1311 = vcvt.s32.f32 %v1279
        %v1312 = vcvt.s32.f32 %v1280
        %v1313 = vcvt.s32.f32 %v1281
        %v1314 = vcvt.s32.f32 %v1282
        %v1315 = vcvt.s32.f32 %v1283
        %v1316 = vcvt.s32.f32 %v1284
        %v1317 = vcvt.s32.f32 %v1285
        %v1318 = vcvt.s32.f32 %v1286
        %v1319 = vcvt.s32.f32 %v1287
        %v1320 = vcvt.s32.f32 %v1288
        %v1321 = vcvt.s32.f32 %v1289
        %v1322 = vcvt.s32.f32 %v1290
        %v1323 = vcvt.s32.f32 %v1291
        %v1324 = vcvt.s32.f32 %v1292
        %v1325 = vcvt.s32.f32 %v1293
        %v1326 = vcvt.s32.f32 %v1294
        %v1327 = vcvt.s32.f32 %v1295
        %v1328 = vcvt.s32.f32 %v1296
        %v1329 = vcvt.s32.f32 %v1297
        %v1330 = vcvt.s32.f32 %v1298
        %v1331 = vcvt.s32.f32 %v1299
        %v1332 = vcvt.s32.f32 %v1300
        %v1333 = vcvt.s32.f32 %v1301
        %v1334 = vcvt.s32.f32 %v1302
        %v1335 = vcvt.s32.f32 %v1303
        %v1336 = vcvt.s32.f32 %v1304
        %v1337 = vcvt.s32.f32 %v1305
        %v1338 = vmul.f32 %v889, %v1306
        %v1339 = vmul.f32 %v892, %v1307
        %v1340 = vmul.f32 %v897, %v1308
        %v1341 = vmul.f32 %v900, %v1309
        %v1342 = vmul.f32 %v905, %v1310
        %v1343 = vmul.f32 %v908, %v1311
        %v1344 = vmul.f32 %v913, %v1312
        %v1345 = vmul.f32 %v916, %v1313
        %v1346 = vmul.f32 %v921, %v1314
        %v1347 = vmul.f32 %v924, %v1315
        %v1348 = vmul.f32 %v929, %v1316
        %v1349 = vmul.f32 %v932, %v1317
        %v1350 = vmul.f32 %v937, %v1318
        %v1351 = vmul.f32 %v940, %v1319
        %v1352 = vmul.f32 %v945, %v1320
        %v1353 = vmul.f32 %v948, %v1321
        %v1354 = vmul.f32 %v953, %v1322
        %v1355 = vmul.f32 %v956, %v1323
        %v1356 = vmul.f32 %v961, %v1324
        %v1357 = vmul.f32 %v964, %v1325
        %v1358 = vmul.f32 %v969, %v1326
        %v1359 = vmul.f32 %v972, %v1327
        %v1360 = vmul.f32 %v977, %v1328
        %v1361 = vmul.f32 %v980, %v1329
        %v1362 = vmul.f32 %v985, %v1330
        %v1363 = vmul.f32 %v988, %v1331
        %v1364 = vmul.f32 %v993, %v1332
        %v1365 = vmul.f32 %v996, %v1333
        %v1366 = vmul.f32 %v1001, %v1334
        %v1367 = vmul.f32 %v1004, %v1335
        %v1368 = vmul.f32 %v1009, %v1336
        %v1369 = vmul.f32 %v1012, %v1337
        %v1370 = vadd.f32 %v1338, %v1339
        %v1371 = vadd.f32 %v1370, %v1340
        %v1372 = vadd.f32 %v1371, %v1341
        %v1373 = vadd.f32 %v1372, %v1342
        %v1374 = vadd.f32 %v1373, %v1343
        %v1375 = vadd.f32 %v1374, %v1344
        %v1376 = vadd.f32 %v1375, %v1345
        %v1377 = vadd.f32 %v1376, %v1346
        %v1378 = vadd.f32 %v1377, %v1347
        %v1379 = vadd.f32 %v1378, %v1348
        %v1380 = vadd.f32 %v1379, %v1349
        %v1381 = vadd.f32 %v1380, %v1350
        %v1382 = vadd.f32 %v1381, %v1351
        %v1383 = vadd.f32 %v1382, %v1352
        %v1384 = vadd.f32 %v1383, %v1353
        %v1385 = vadd.f32 %v1384, %v1354
        %v1386 = vadd.f32 %v1385, %v1355
        %v1387 = vadd.f32 %v1386, %v1356
        %v1388 = vadd.f32 %v1387, %v1357
        %v1389 = vadd.f32 %v1388, %v1358
        %v1390 = vadd.f32 %v1389, %v1359
        %v1391 = vadd.f32 %v1390, %v1360
        %v1392 = vadd.f32 %v1391, %v1361
        %v1393 = vadd.f32 %v1392, %v1362
        %v1394 = vadd.f32 %v1393, %v1363
        %v1395 = vadd.f32 %v1394, %v1364
        %v1396 = vadd.f32 %v1395, %v1365
        %v1397 = vadd.f32 %v1396, %v1366
        %v1398 = vadd.f32 %v1397, %v1367
        %v1399 = vadd.f32 %v1398, %v1368
        %v1400 = vadd.f32 %v1399, %v1369
        %v1401 = vrot.slane %v1400, 4
        %v1402 = vadd.f32 %v1400, %v1401
        %v1403 = vrot.slane %v1402, 2
        %v1404 = vadd.f32 %v1402, %v1403
        %v1405 = vrot.slane %v1404, 1
        %v1406 = vadd.f32 %v1404, %v1405
        %1407 = vst [vmem:[%s308] sm:$0x1] %v1406
        %v1408 = vmul.f32 %v1338, %v889
        %v1409 = vmul.f32 %v1339, %v892
        %v1410 = vmul.f32 %v1340, %v897
        %v1411 = vmul.f32 %v1341, %v900
        %v1412 = vmul.f32 %v1342, %v905
        %v1413 = vmul.f32 %v1343, %v908
        %v1414 = vmul.f32 %v1344, %v913
        %v1415 = vmul.f32 %v1345, %v916
        %v1416 = vmul.f32 %v1346, %v921
        %v1417 = vmul.f32 %v1347, %v924
        %v1418 = vmul.f32 %v1348, %v929
        %v1419 = vmul.f32 %v1349, %v932
        %v1420 = vmul.f32 %v1350, %v937
        %v1421 = vmul.f32 %v1351, %v940
        %v1422 = vmul.f32 %v1352, %v945
        %v1423 = vmul.f32 %v1353, %v948
        %v1424 = vmul.f32 %v1354, %v953
        %v1425 = vmul.f32 %v1355, %v956
        %v1426 = vmul.f32 %v1356, %v961
        %v1427 = vmul.f32 %v1357, %v964
        %v1428 = vmul.f32 %v1358, %v969
        %v1429 = vmul.f32 %v1359, %v972
        %v1430 = vmul.f32 %v1360, %v977
        %v1431 = vmul.f32 %v1361, %v980
        %v1432 = vmul.f32 %v1362, %v985
        %v1433 = vmul.f32 %v1363, %v988
        %v1434 = vmul.f32 %v1364, %v993
        %v1435 = vmul.f32 %v1365, %v996
        %v1436 = vmul.f32 %v1366, %v1001
        %v1437 = vmul.f32 %v1367, %v1004
        %v1438 = vmul.f32 %v1368, %v1009
        %v1439 = vmul.f32 %v1369, %v1012
        %v1440 = vadd.f32 %v1408, %v1409
        %v1441 = vadd.f32 %v1440, %v1410
        %v1442 = vadd.f32 %v1441, %v1411
        %v1443 = vadd.f32 %v1442, %v1412
        %v1444 = vadd.f32 %v1443, %v1413
        %v1445 = vadd.f32 %v1444, %v1414
        %v1446 = vadd.f32 %v1445, %v1415
        %v1447 = vadd.f32 %v1446, %v1416
        %v1448 = vadd.f32 %v1447, %v1417
        %v1449 = vadd.f32 %v1448, %v1418
        %v1450 = vadd.f32 %v1449, %v1419
        %v1451 = vadd.f32 %v1450, %v1420
        %v1452 = vadd.f32 %v1451, %v1421
        %v1453 = vadd.f32 %v1452, %v1422
        %v1454 = vadd.f32 %v1453, %v1423
        %v1455 = vadd.f32 %v1454, %v1424
        %v1456 = vadd.f32 %v1455, %v1425
        %v1457 = vadd.f32 %v1456, %v1426
        %v1458 = vadd.f32 %v1457, %v1427
        %v1459 = vadd.f32 %v1458, %v1428
        %v1460 = vadd.f32 %v1459, %v1429
        %v1461 = vadd.f32 %v1460, %v1430
        %v1462 = vadd.f32 %v1461, %v1431
        %v1463 = vadd.f32 %v1462, %v1432
        %v1464 = vadd.f32 %v1463, %v1433
        %v1465 = vadd.f32 %v1464, %v1434
        %v1466 = vadd.f32 %v1465, %v1435
        %v1467 = vadd.f32 %v1466, %v1436
        %v1468 = vadd.f32 %v1467, %v1437
        %v1469 = vadd.f32 %v1468, %v1438
        %v1470 = vadd.f32 %v1469, %v1439
        %v1471 = vrot.slane %v1470, 4
        %v1472 = vadd.f32 %v1470, %v1471
        %v1473 = vrot.slane %v1472, 2
        %v1474 = vadd.f32 %v1472, %v1473
        %v1475 = vrot.slane %v1474, 1
        %v1476 = vadd.f32 %v1474, %v1475
        %1477 = vst [vmem:[%s314] sm:$0x1] %v1476
        %s1478 = sand.u32 %s125, 1
        %s1479 = scalar_lea.sflag [#allocation4], %s1478
        %s1480 = sand.u32 %s125, 1
        %s1481 = smul.addr %s1480, 128
        %s1482 = scalar_lea.vmem [#allocation8], %s1481
        %s1483 = sand.u32 %s28, 1
        %s1484 = scalar_lea.sflag [#allocation10], %s1483
        %s1485 = sand.u32 %s151, 1
        %s1486 = scalar_lea.vmem [#allocation9], %s1485
        %s1487 = sand.u32 %s28, 1
        %s1488 = scalar_lea.sflag [#allocation10], %s1487
        %s1489 = sand.u32 %s177, 1
        %s1490 = scalar_lea.vmem [#allocation11], %s1489
        // Predicated region
        $region49: #{tpu_custom_call.1} parent=35 // pred_check
          %p1491 = pneg %p135
        $region50: #{tpu_custom_call.1} parent=35 // pred_check_branch
          %1493 = sbr.rel (%p1491) target = $region52
        $region51: #{tpu_custom_call.1} parent=35 // pred_region
          %s1494 = smul.u32 32, %s28
          %s1496 = ssub.s32 2048, 2048
          %1497 = vsyncadd %s1479, %s1496
          %s1498 = smul.addr %s1494, 64
          %s1499 = scalar_lea.hbm %s4, %s1498
          %s1500 = sshll.u32 %s1482, 4
          %s1501 = int_to_ptr.vmem [resolvable:$true] %s1500
          %1506 = dma.vmem_to_hbm [thread:$0]  %s1501, 2048, %s1499, %s1479, 64, 64, 4
        $region52: #{tpu_custom_call.1} parent=35 // pred_fallthru
          _
        // Predicated region
        $region53: #{tpu_custom_call.1} parent=35 // pred_check
          %p1507 = pneg %p161
        $region54: #{tpu_custom_call.1} parent=35 // pred_check_branch
          %1509 = sbr.rel (%p1507) target = $region56
        $region55: #{tpu_custom_call.1} parent=35 // pred_region
          %s1511 = ssub.s32 16, 16
          %1512 = vsyncadd %s1484, %s1511
          %s1513 = smul.addr %s28, 16
          %s1514 = scalar_lea.hbm %s5, %s1513
          %s1516 = sshll.u32 %s1486, 4
          %s1517 = int_to_ptr.vmem [resolvable:$true] %s1516
          %1519 = dma.vmem_to_hbm [thread:$0]  %s1517, 16, %s1514, %s1484
        $region56: #{tpu_custom_call.1} parent=35 // pred_fallthru
          _
        // Predicated region
        $region57: #{tpu_custom_call.1} parent=35 // pred_check
          %p1520 = pneg %p187
        $region58: #{tpu_custom_call.1} parent=35 // pred_check_branch
          %1522 = sbr.rel (%p1520) target = $region60
        $region59: #{tpu_custom_call.1} parent=35 // pred_region
          %s1524 = ssub.s32 16, 16
          %1525 = vsyncadd %s1488, %s1524
          %s1526 = smul.addr %s28, 16
          %s1527 = scalar_lea.hbm %s6, %s1526
          %s1529 = sshll.u32 %s1490, 4
          %s1530 = int_to_ptr.vmem [resolvable:$true] %s1529
          %1532 = dma.vmem_to_hbm [thread:$0]  %s1530, 16, %s1527, %s1488
        $region60: #{tpu_custom_call.1} parent=35 // pred_fallthru
          _
      $region36: #{tpu_custom_call.1} parent=5 // pred_fallthru
        _
      %p1533 = scmp.le.s32.totalorder 2, %s23
      // Predicated region
      $region61: #{tpu_custom_call.1} parent=5 // pred_check
        %p1534 = pneg %p1533
      $region62: #{tpu_custom_call.1} parent=5 // pred_check_branch
        %1536 = sbr.rel (%p1534) target = $region64
      $region63: #{tpu_custom_call.1} parent=5 // pred_region
        %s1537 = ssub.s32 %s23, 2
        // Predicated region
        $region65: #{tpu_custom_call.1} parent=63 // pred_check
          %p1538 = pneg %p141
        $region66: #{tpu_custom_call.1} parent=63 // pred_check_branch
          %1540 = sbr.rel (%p1538) target = $region68
        $region67: #{tpu_custom_call.1} parent=63 // pred_region
          %s1541 = sand.u32 %s126, 1
          %s1542 = scalar_lea.sflag [#allocation4], %s1541
          %s1543 = sand.u32 %s126, 1
          %s1544 = smul.addr %s1543, 128
          %s1545 = scalar_lea.vmem [#allocation8], %s1544
          %1546 = dma.done %s1542, 2048
        $region68: #{tpu_custom_call.1} parent=63 // pred_fallthru
          _
        // Predicated region
        $region69: #{tpu_custom_call.1} parent=63 // pred_check
          %p1547 = pneg %p167
        $region70: #{tpu_custom_call.1} parent=63 // pred_check_branch
          %1549 = sbr.rel (%p1547) target = $region72
        $region71: #{tpu_custom_call.1} parent=63 // pred_region
          %s1550 = sand.u32 %s29, 1
          %s1551 = scalar_lea.sflag [#allocation10], %s1550
          %s1552 = sand.u32 %s152, 1
          %s1553 = scalar_lea.vmem [#allocation9], %s1552
          %1554 = dma.done %s1551, 16
        $region72: #{tpu_custom_call.1} parent=63 // pred_fallthru
          _
        // Predicated region
        $region73: #{tpu_custom_call.1} parent=63 // pred_check
          %p1555 = pneg %p193
        $region74: #{tpu_custom_call.1} parent=63 // pred_check_branch
          %1557 = sbr.rel (%p1555) target = $region76
        $region75: #{tpu_custom_call.1} parent=63 // pred_region
          %s1558 = sand.u32 %s29, 1
          %s1559 = scalar_lea.sflag [#allocation10], %s1558
          %s1560 = sand.u32 %s178, 1
          %s1561 = scalar_lea.vmem [#allocation11], %s1560
          %1562 = dma.done %s1559, 16
        $region76: #{tpu_custom_call.1} parent=63 // pred_fallthru
          _
      $region64: #{tpu_custom_call.1} parent=5 // pred_fallthru
        _
    $region6: #{tpu_custom_call.1} parent=1 // loop_footer
      %s27 = sadd.s32 1, %s23
    $region7: #{tpu_custom_call.1} parent=1 // loop_footer_branch
      %22 = sbr.rel target = $region3
    $region8: #{tpu_custom_call.1} parent=1 // loop_exit
      _
    %1563 = vsyncpa [#allocation3], 1
    %s1564 = scalar_lea.sflag [#allocation3], 1
    %1565 = vsyncpa %s1564, 1
    %1566 = vsyncpa [#allocation6], 1
    %1567 = vsyncpa [#allocation4], 1
    %s1568 = scalar_lea.sflag [#allocation4], 1
    %1569 = vsyncpa %s1568, 1
    %1570 = vsyncpa [#allocation10], 1
    %s1571 = scalar_lea.sflag [#allocation10], 1
    %1572 = vsyncpa %s1571, 1

</llo_original>
